<compile_context>
chip_gen: v5e
topology: v5e:2x2
jax: 0.10.0
libtpu: 0.0.40
codegen_flags: <defaults>
</compile_context>

<pallas_src>
import jax
import jax.numpy as jnp
from jax import lax
from jax.experimental import pallas as pl
from jax.experimental.pallas import tpu as pltpu


LANE = 128


# ---------------------------------------------------------------------------
# helpers
# ---------------------------------------------------------------------------
def _round_up(x, m):
    return ((x + m - 1) // m) * m


def _vmem_capacity_bytes():
    """Physical VMEM per core; conservative fallback if the query fails."""
    try:
        info = pltpu.get_tpu_info()
        cap = getattr(info, "vmem_capacity_bytes", None)
        if cap:
            return int(cap)
    except Exception:
        pass
    return 64 << 20  # v7x-sized fallback (v5e/v6e actually have 128 MiB)


def _attn_vmem_bytes(tq, tk, cp, cq, rsz, csz):
    """Rough VMEM footprint of one attention grid step (double-buffered)."""
    blocks = 2 * (tq * cq * csz          # q tile
                  + cq * tk * csz        # k^T tile
                  + tk * cp * csz        # v tile
                  + 2 * tq * cp * rsz)   # residual x + output
    scratch = tq * (cp + 16) * 4         # f32 acc + m + l
    temps = tq * tk * (4 + csz)          # s (f32) + p (compute dtype)
    return blocks + scratch + temps


# ---------------------------------------------------------------------------
# Kernel 1: 1x1-conv projections (q, k, v), hoisted out of the attention loop
# ---------------------------------------------------------------------------
def _proj_kernel(x_ref, wq_ref, bq_ref, wk_ref, bk_ref, wv_ref, bv_ref,
                 q_ref, k_ref, v_ref):
    x = x_ref[0].astype(wq_ref.dtype)                                # (tr, Cp)
    q = jnp.dot(x, wq_ref[...], preferred_element_type=jnp.float32) + bq_ref[...]
    k = jnp.dot(x, wk_ref[...], preferred_element_type=jnp.float32) + bk_ref[...]
    v = jnp.dot(x, wv_ref[...], preferred_element_type=jnp.float32) + bv_ref[...]
    q_ref[0] = q.astype(q_ref.dtype)
    k_ref[0] = k.astype(k_ref.dtype)
    v_ref[0] = v.astype(v_ref.dtype)


# ---------------------------------------------------------------------------
# Kernel 2: position attention (online softmax; single kv step when K/V are
#           VMEM-resident) + gamma * out + residual
# ---------------------------------------------------------------------------
def _make_attn_kernel(tk, n_valid, n_total, compute_dtype):
    mask_keys = n_total > n_valid        # static: only emit masking if padded

    def kernel(q_ref, kT_ref, v_ref, x_ref, gamma_ref, o_ref,
               m_sc, l_sc, acc_sc):
        ki = pl.program_id(2)

        @pl.when(ki == 0)
        def _():
            m_sc[...] = jnp.full_like(m_sc, -jnp.inf)
            l_sc[...] = jnp.zeros_like(l_sc)
            acc_sc[...] = jnp.zeros_like(acc_sc)

        q = q_ref[0]                                                 # (tq, Cq)
        kT = kT_ref[0]                                               # (Cq, tk)
        v = v_ref[0]                                                 # (tk, Cp)

        # Native (M,K)@(K,N) MXU feed; no per-step transpose.
        s = jnp.dot(q, kT, preferred_element_type=jnp.float32)      # (tq, tk)
        if mask_keys:
            col = lax.broadcasted_iota(jnp.int32, s.shape, 1) + ki * tk
            s = jnp.where(col < n_valid, s, -1e30)

        m_prev = m_sc[...]
        m_new = jnp.maximum(m_prev, jnp.max(s, axis=-1, keepdims=True))
        alpha = jnp.exp(m_prev - m_new)
        p = jnp.exp(s - m_new)                                       # un-normalized
        l_sc[...] = alpha * l_sc[...] + jnp.sum(p, axis=-1, keepdims=True)
        acc_sc[...] = alpha * acc_sc[...] + jnp.dot(
            p.astype(compute_dtype), v, preferred_element_type=jnp.float32)
        m_sc[...] = m_new

        @pl.when(ki == pl.num_programs(2) - 1)
        def _():
            gamma = gamma_ref[0, 0]
            attn_out = acc_sc[...] / l_sc[...]       # exact; once per q tile
            o_ref[0] = (gamma * attn_out
                        + x_ref[0].astype(jnp.float32)).astype(o_ref.dtype)

    return kernel


# ---------------------------------------------------------------------------
# Wrapper
# ---------------------------------------------------------------------------
def pam_forward(x_nchw, wq, bq, wk, bk, wv, bv, gamma, *, q_tile=512,
                compute_dtype=None):
    """PAM_Module forward.  x_nchw: (B, C, H, W); weights in PyTorch Conv2d
    1x1 layout (out, in) / (out,); gamma scalar."""
    B, C, H, W = x_nchw.shape
    N = H * W
    Cq = wq.shape[0]
    dt = x_nchw.dtype
    cdt = jnp.bfloat16 if (compute_dtype is None and dt == jnp.float32) \
        else (compute_dtype or dt)
    rsz = jnp.dtype(dt).itemsize
    csz = jnp.dtype(cdt).itemsize

    Cp = _round_up(C, LANE)                           # value / residual lanes
    sub = 16 if csz == 2 else 8                       # sublane quantum
    Cq8 = _round_up(Cq, sub)                          # q/k inner dim (NOT 128)

    # ------------------------- tile / padding selection ---------------------
    tq = min(_round_up(q_tile, 8), _round_up(N, 8))
    N_pad = _round_up(N, tq)
    # v7x has 2 TensorCores: keep at least 2 parallel grid units.
    while B * (N_pad // tq) < 2 and tq % 16 == 0 and tq > 8:
        tq //= 2
    tr = tq                                           # projection row tile
    for mult in (8, 4, 2):
        if mult * tq <= 1024 and N_pad % (mult * tq) == 0:
            tr = mult * tq
            break

    budget = int(0.8 * _vmem_capacity_bytes())        # generation-aware cap
    # Resident K/V per batch if it fits (kv axis collapses to one step);
    # otherwise flash-style online softmax over kv tiles of size tq.
    if _attn_vmem_bytes(tq, N_pad, Cp, Cq8, rsz, csz) <= budget - (8 << 20):
        tk = N_pad
    else:
        tk = tq

    # ------------------ layout: NCHW -> (B, N, C), padded --------------------
    x_flat = jnp.transpose(x_nchw.reshape(B, C, N), (0, 2, 1))
    if N_pad != N or Cp != C:
        x_pad = jnp.pad(x_flat, ((0, 0), (0, N_pad - N), (0, Cp - C)))
    else:
        x_pad = x_flat

    def pad_wT(w, out_p):          # (out, in) -> (Cp, out_p), compute dtype
        return jnp.pad(jnp.transpose(w).astype(cdt),
                       ((0, Cp - C), (0, out_p - w.shape[0])))

    def pad_bias(bias, out_p):     # (out,) -> (1, out_p), f32
        return jnp.pad(bias.astype(jnp.float32).reshape(1, -1),
                       ((0, 0), (0, out_p - bias.shape[0])))

    wq_t, wk_t, wv_t = pad_wT(wq, Cq8), pad_wT(wk, Cq8), pad_wT(wv, Cp)
    bq_r, bk_r, bv_r = pad_bias(bq, Cq8), pad_bias(bk, Cq8), pad_bias(bv, Cp)
    gamma_r = jnp.reshape(gamma, (1, 1)).astype(jnp.float32)

    # ------------------------------ projections ------------------------------
    # Weights use constant-index full blocks (small in bf16; double-buffering
    # them is acceptable and avoids relying on single-buffer pipeline modes).
    const = lambda shp: pl.BlockSpec(shp, lambda b, r: (0, 0))
    proj_cost = pl.CostEstimate(
        flops=int(2 * B * N_pad * Cp * (2 * Cq8 + Cp)),
        transcendentals=0,
        bytes_accessed=int(B * N_pad * (Cp * (rsz + csz) + 2 * Cq8 * csz)
                           + Cp * (2 * Cq8 + Cp) * csz))

    q_all, k_all, v_all = pl.pallas_call(
        _proj_kernel,
        out_shape=(jax.ShapeDtypeStruct((B, N_pad, Cq8), cdt),
                   jax.ShapeDtypeStruct((B, N_pad, Cq8), cdt),
                   jax.ShapeDtypeStruct((B, N_pad, Cp), cdt)),
        grid_spec=pltpu.PrefetchScalarGridSpec(
            num_scalar_prefetch=0,
            grid=(B, N_pad // tr),
            in_specs=[
                pl.BlockSpec((1, tr, Cp), lambda b, r: (b, r, 0)),   # x
                const((Cp, Cq8)), const((1, Cq8)),                   # Wq^T, bq
                const((Cp, Cq8)), const((1, Cq8)),                   # Wk^T, bk
                const((Cp, Cp)), const((1, Cp)),                     # Wv^T, bv
            ],
            out_specs=(
                pl.BlockSpec((1, tr, Cq8), lambda b, r: (b, r, 0)),  # q
                pl.BlockSpec((1, tr, Cq8), lambda b, r: (b, r, 0)),  # k
                pl.BlockSpec((1, tr, Cp), lambda b, r: (b, r, 0)),   # v
            )),
        compiler_params=pltpu.CompilerParams(
            dimension_semantics=("parallel", "parallel"),
            vmem_limit_bytes=budget),
        cost_estimate=proj_cost,
    )(x_pad, wq_t, bq_r, wk_t, bk_r, wv_t, bv_r)

    # K pre-transposed for the attention kernel: (B, Cq8, N_pad) with N on the
    # lane axis.  This is a tiny tensor (Cq = C/8), so the one-off XLA
    # transpose here is negligible and avoids any in-kernel transpose.
    kT_all = jnp.swapaxes(k_all, 1, 2)

    # ------------------------------ attention --------------------------------
    kv_steps = N_pad // tk
    rereads = 1 if tk == N_pad else (N_pad // tq)
    attn_cost = pl.CostEstimate(
        flops=int(2 * B * N_pad * N_pad * (Cq8 + Cp)),
        transcendentals=int(B * N_pad * N_pad),
        bytes_accessed=int(B * N_pad * (Cq8 * csz
                                        + rereads * (Cq8 + Cp) * csz
                                        + 2 * Cp * rsz)))

    out_pad = pl.pallas_call(
        _make_attn_kernel(tk, N, N_pad, cdt),
        out_shape=jax.ShapeDtypeStruct((B, N_pad, Cp), dt),
        grid_spec=pltpu.PrefetchScalarGridSpec(
            num_scalar_prefetch=0,
            grid=(B, N_pad // tq, kv_steps),
            in_specs=[
                pl.BlockSpec((1, tq, Cq8), lambda b, qi, ki: (b, qi, 0)),   # q
                pl.BlockSpec((1, Cq8, tk), lambda b, qi, ki: (b, 0, ki)),   # k^T
                pl.BlockSpec((1, tk, Cp), lambda b, qi, ki: (b, ki, 0)),    # v
                pl.BlockSpec((1, tq, Cp), lambda b, qi, ki: (b, qi, 0)),    # x (residual)
                pl.BlockSpec(memory_space=pltpu.MemorySpace.SMEM),          # gamma
            ],
            out_specs=pl.BlockSpec((1, tq, Cp), lambda b, qi, ki: (b, qi, 0)),
            scratch_shapes=[
                pltpu.VMEM((tq, 1), jnp.float32),    # running max m
                pltpu.VMEM((tq, 1), jnp.float32),    # running denom l
                pltpu.VMEM((tq, Cp), jnp.float32),   # un-normalized output acc
            ]),
        compiler_params=pltpu.CompilerParams(
            dimension_semantics=("parallel", "parallel", "arbitrary"),
            vmem_limit_bytes=budget),
        cost_estimate=attn_cost,
        input_output_aliases={3: 0},   # reuse the residual buffer as output
    )(q_all, kT_all, v_all, x_pad, gamma_r)

    # un-pad, (B, N, C) -> (B, C, H, W)
    out_flat = out_pad[:, :N, :C]
    return jnp.transpose(out_flat, (0, 2, 1)).reshape(B, C, H, W)


# ---------------------------------------------------------------------------
# Pure-JAX reference (matches the PyTorch module)
# ---------------------------------------------------------------------------
def pam_reference(x_nchw, wq, bq, wk, bk, wv, bv, gamma):
    B, C, H, W = x_nchw.shape
    N = H * W
    xf = jnp.transpose(x_nchw.reshape(B, C, N), (0, 2, 1))          # (B, N, C)
    q = xf @ wq.T + bq
    k = xf @ wk.T + bk
    v = xf @ wv.T + bv
    energy = jnp.einsum('bnc,bmc->bnm', q, k)
    attn = jax.nn.softmax(energy, axis=-1)
    out = jnp.einsum('bnm,bmc->bnc', attn, v)
    out = gamma * out + xf
    return jnp.transpose(out, (0, 2, 1)).reshape(B, C, H, W)


# ---------------------------------------------------------------------------
# self-test
# ---------------------------------------------------------------------------
def _run_case(key, B, C, H, W):
    Cq = max(C // 8, 1)
    kx, kq, kk, kv, kbq, kbk, kbv = jax.random.split(key, 7)
    x = jax.random.normal(kx, (B, C, H, W), dtype=jnp.float32)
    wq = jax.random.normal(kq, (Cq, C), dtype=jnp.float32) * 0.1
    wk = jax.random.normal(kk, (Cq, C), dtype=jnp.float32) * 0.1
    wv = jax.random.normal(kv, (C, C), dtype=jnp.float32) * 0.1
    bq = jax.random.normal(kbq, (Cq,), dtype=jnp.float32) * 0.1
    bk = jax.random.normal(kbk, (Cq,), dtype=jnp.float32) * 0.1
    bv = jax.random.normal(kbv, (C,), dtype=jnp.float32) * 0.1
    # PAM_Module.__init__ sets gamma = 0; use a nonzero value so the attention
    # path actually contributes (still deterministic, in-script).
    gamma = jnp.float32(0.5)

    out = jax.jit(pam_forward)(x, wq, bq, wk, bk, wv, bv, gamma)
    out = jax.block_until_ready(out)
    ref = pam_reference(x, wq, bq, wk, bk, wv, bv, gamma)

    assert out.shape == (B, C, H, W)
    # q/k/v and the softmax numerator run in bf16 (f32 accumulation); the
    # tolerance reflects bf16 inputs vs. the pure-f32 reference.
    assert jnp.allclose(out, ref, rtol=2e-2, atol=2e-2), (
        f"mismatch vs reference, max abs err "
        f"{jnp.max(jnp.abs(out - ref)):.3e}")


if __name__ == "__main__":
    key = jax.random.PRNGKey(0)
    k1, k2 = jax.random.split(key)
    # Small shapes consistent with the module (in_dim must be >= 8 for C // 8).
    _run_case(k1, B=2, C=16, H=8, W=8)     # N = 64: no padding path
    _run_case(k2, B=1, C=32, H=10, W=10)   # N = 100: exercises padding + key masking
    print("KERNEL_OK")
</pallas_src>

<mosaic_0001>
module attributes {stable_mosaic.version = 11 : i64} {
  func.func @_proj_kernel(%arg0: i32, %arg1: i32, %arg2: memref<1x64x128xf32, #tpu.memory_space<vmem>>, %arg3: memref<128x16xbf16, #tpu.memory_space<vmem>>, %arg4: memref<1x16xf32, #tpu.memory_space<vmem>>, %arg5: memref<128x16xbf16, #tpu.memory_space<vmem>>, %arg6: memref<1x16xf32, #tpu.memory_space<vmem>>, %arg7: memref<128x128xbf16, #tpu.memory_space<vmem>>, %arg8: memref<1x128xf32, #tpu.memory_space<vmem>>, %arg9: memref<1x64x16xbf16, #tpu.memory_space<vmem>>, %arg10: memref<1x64x16xbf16, #tpu.memory_space<vmem>>, %arg11: memref<1x64x128xbf16, #tpu.memory_space<vmem>>) attributes {dimension_semantics = [#tpu.dimension_semantics<parallel>, #tpu.dimension_semantics<parallel>], iteration_bounds = array<i64: 2, 1>, scalar_prefetch = 0 : i64, scratch_operands = 0 : i64, tpu.core_type = #tpu.core_type<tc>, window_params = [{transform_indices = @transform_0, window_bounds = array<i64: 1, 64, 128>}, {pipeline_mode = #tpu.pipeline_mode<synchronous>, transform_indices = @transform_1, window_bounds = array<i64: 128, 16>}, {pipeline_mode = #tpu.pipeline_mode<synchronous>, transform_indices = @transform_2, window_bounds = array<i64: 1, 16>}, {pipeline_mode = #tpu.pipeline_mode<synchronous>, transform_indices = @transform_3, window_bounds = array<i64: 128, 16>}, {pipeline_mode = #tpu.pipeline_mode<synchronous>, transform_indices = @transform_4, window_bounds = array<i64: 1, 16>}, {pipeline_mode = #tpu.pipeline_mode<synchronous>, transform_indices = @transform_5, window_bounds = array<i64: 128, 128>}, {pipeline_mode = #tpu.pipeline_mode<synchronous>, transform_indices = @transform_6, window_bounds = array<i64: 1, 128>}, {transform_indices = @transform_7, window_bounds = array<i64: 1, 64, 16>}, {transform_indices = @transform_8, window_bounds = array<i64: 1, 64, 16>}, {transform_indices = @transform_9, window_bounds = array<i64: 1, 64, 128>}]} {
    %c0 = arith.constant 0 : index
    %c0_0 = arith.constant 0 : index
    %c0_1 = arith.constant 0 : index
    %0 = vector.load %arg2[%c0, %c0_0, %c0_1] : memref<1x64x128xf32, #tpu.memory_space<vmem>>, vector<1x64x128xf32>
    %1 = vector.shape_cast %0 : vector<1x64x128xf32> to vector<64x128xf32>
    %2 = arith.truncf %1 : vector<64x128xf32> to vector<64x128xbf16>
    %c0_2 = arith.constant 0 : index
    %c0_3 = arith.constant 0 : index
    %3 = vector.load %arg3[%c0_2, %c0_3] : memref<128x16xbf16, #tpu.memory_space<vmem>>, vector<128x16xbf16>
    %cst = arith.constant dense<0.000000e+00> : vector<64x16xf32>
    %4 = tpu.matmul %2, %3, %cst {dimension_numbers = #tpu.dot_dimension_numbers<[1], [0], [0], [1], [0, 0, 1, 1], [], []>} : vector<64x128xbf16>, vector<128x16xbf16>, vector<64x16xf32> -> vector<64x16xf32>
    %c0_4 = arith.constant 0 : index
    %c0_5 = arith.constant 0 : index
    %5 = vector.load %arg4[%c0_4, %c0_5] : memref<1x16xf32, #tpu.memory_space<vmem>>, vector<1x16xf32>
    %6 = vector.broadcast %5 : vector<1x16xf32> to vector<64x16xf32>
    %7 = arith.addf %4, %6 : vector<64x16xf32>
    %c0_6 = arith.constant 0 : index
    %c0_7 = arith.constant 0 : index
    %8 = vector.load %arg5[%c0_6, %c0_7] : memref<128x16xbf16, #tpu.memory_space<vmem>>, vector<128x16xbf16>
    %cst_8 = arith.constant dense<0.000000e+00> : vector<64x16xf32>
    %9 = tpu.matmul %2, %8, %cst_8 {dimension_numbers = #tpu.dot_dimension_numbers<[1], [0], [0], [1], [0, 0, 1, 1], [], []>} : vector<64x128xbf16>, vector<128x16xbf16>, vector<64x16xf32> -> vector<64x16xf32>
    %c0_9 = arith.constant 0 : index
    %c0_10 = arith.constant 0 : index
    %10 = vector.load %arg6[%c0_9, %c0_10] : memref<1x16xf32, #tpu.memory_space<vmem>>, vector<1x16xf32>
    %11 = vector.broadcast %10 : vector<1x16xf32> to vector<64x16xf32>
    %12 = arith.addf %9, %11 : vector<64x16xf32>
    %c0_11 = arith.constant 0 : index
    %c0_12 = arith.constant 0 : index
    %13 = vector.load %arg7[%c0_11, %c0_12] : memref<128x128xbf16, #tpu.memory_space<vmem>>, vector<128x128xbf16>
    %cst_13 = arith.constant dense<0.000000e+00> : vector<64x128xf32>
    %14 = tpu.matmul %2, %13, %cst_13 {dimension_numbers = #tpu.dot_dimension_numbers<[1], [0], [0], [1], [0, 0, 1, 1], [], []>} : vector<64x128xbf16>, vector<128x128xbf16>, vector<64x128xf32> -> vector<64x128xf32>
    %c0_14 = arith.constant 0 : index
    %c0_15 = arith.constant 0 : index
    %15 = vector.load %arg8[%c0_14, %c0_15] : memref<1x128xf32, #tpu.memory_space<vmem>>, vector<1x128xf32>
    %16 = vector.broadcast %15 : vector<1x128xf32> to vector<64x128xf32>
    %17 = arith.addf %14, %16 : vector<64x128xf32>
    %18 = arith.truncf %7 : vector<64x16xf32> to vector<64x16xbf16>
    %c0_16 = arith.constant 0 : index
    %c0_17 = arith.constant 0 : index
    %c0_18 = arith.constant 0 : index
    %19 = vector.load %arg9[%c0_16, %c0_17, %c0_18] : memref<1x64x16xbf16, #tpu.memory_space<vmem>>, vector<1x64x16xbf16>
    %20 = vector.shape_cast %19 : vector<1x64x16xbf16> to vector<64x16xbf16>
    %21 = vector.shape_cast %18 : vector<64x16xbf16> to vector<1x64x16xbf16>
    tpu.vector_store %arg9[%c0_16, %c0_17, %c0_18], %21 {strides = array<i32>} : memref<1x64x16xbf16, #tpu.memory_space<vmem>>, vector<1x64x16xbf16>,
    %22 = arith.truncf %12 : vector<64x16xf32> to vector<64x16xbf16>
    %c0_19 = arith.constant 0 : index
    %c0_20 = arith.constant 0 : index
    %c0_21 = arith.constant 0 : index
    %23 = vector.load %arg10[%c0_19, %c0_20, %c0_21] : memref<1x64x16xbf16, #tpu.memory_space<vmem>>, vector<1x64x16xbf16>
    %24 = vector.shape_cast %23 : vector<1x64x16xbf16> to vector<64x16xbf16>
    %25 = vector.shape_cast %22 : vector<64x16xbf16> to vector<1x64x16xbf16>
    tpu.vector_store %arg10[%c0_19, %c0_20, %c0_21], %25 {strides = array<i32>} : memref<1x64x16xbf16, #tpu.memory_space<vmem>>, vector<1x64x16xbf16>,
    %26 = arith.truncf %17 : vector<64x128xf32> to vector<64x128xbf16>
    %c0_22 = arith.constant 0 : index
    %c0_23 = arith.constant 0 : index
    %c0_24 = arith.constant 0 : index
    %27 = vector.load %arg11[%c0_22, %c0_23, %c0_24] : memref<1x64x128xbf16, #tpu.memory_space<vmem>>, vector<1x64x128xbf16>
    %28 = vector.shape_cast %27 : vector<1x64x128xbf16> to vector<64x128xbf16>
    %29 = vector.shape_cast %26 : vector<64x128xbf16> to vector<1x64x128xbf16>
    tpu.vector_store %arg11[%c0_22, %c0_23, %c0_24], %29 {strides = array<i32>} : memref<1x64x128xbf16, #tpu.memory_space<vmem>>, vector<1x64x128xbf16>,
    return
  }
  func.func @transform_0(%arg0: i32, %arg1: i32) -> (i32, i32, i32) {
    %c0_i32 = arith.constant 0 : i32
    %c0_i32_0 = arith.constant 0 : i32
    return %arg0, %arg1, %c0_i32 : i32, i32, i32
  }
  func.func @transform_1(%arg0: i32, %arg1: i32) -> (i32, i32) {
    %c0_i32 = arith.constant 0 : i32
    %c0_i32_0 = arith.constant 0 : i32
    %c0_i32_1 = arith.constant 0 : i32
    return %c0_i32, %c0_i32_0 : i32, i32
  }
  func.func @transform_2(%arg0: i32, %arg1: i32) -> (i32, i32) {
    %c0_i32 = arith.constant 0 : i32
    %c0_i32_0 = arith.constant 0 : i32
    %c0_i32_1 = arith.constant 0 : i32
    return %c0_i32, %c0_i32_0 : i32, i32
  }
  func.func @transform_3(%arg0: i32, %arg1: i32) -> (i32, i32) {
    %c0_i32 = arith.constant 0 : i32
    %c0_i32_0 = arith.constant 0 : i32
    %c0_i32_1 = arith.constant 0 : i32
    return %c0_i32, %c0_i32_0 : i32, i32
  }
  func.func @transform_4(%arg0: i32, %arg1: i32) -> (i32, i32) {
    %c0_i32 = arith.constant 0 : i32
    %c0_i32_0 = arith.constant 0 : i32
    %c0_i32_1 = arith.constant 0 : i32
    return %c0_i32, %c0_i32_0 : i32, i32
  }
  func.func @transform_5(%arg0: i32, %arg1: i32) -> (i32, i32) {
    %c0_i32 = arith.constant 0 : i32
    %c0_i32_0 = arith.constant 0 : i32
    %c0_i32_1 = arith.constant 0 : i32
    return %c0_i32, %c0_i32_0 : i32, i32
  }
  func.func @transform_6(%arg0: i32, %arg1: i32) -> (i32, i32) {
    %c0_i32 = arith.constant 0 : i32
    %c0_i32_0 = arith.constant 0 : i32
    %c0_i32_1 = arith.constant 0 : i32
    return %c0_i32, %c0_i32_0 : i32, i32
  }
  func.func @transform_7(%arg0: i32, %arg1: i32) -> (i32, i32, i32) {
    %c0_i32 = arith.constant 0 : i32
    %c0_i32_0 = arith.constant 0 : i32
    return %arg0, %arg1, %c0_i32 : i32, i32, i32
  }
  func.func @transform_8(%arg0: i32, %arg1: i32) -> (i32, i32, i32) {
    %c0_i32 = arith.constant 0 : i32
    %c0_i32_0 = arith.constant 0 : i32
    return %arg0, %arg1, %c0_i32 : i32, i32, i32
  }
  func.func @transform_9(%arg0: i32, %arg1: i32) -> (i32, i32, i32) {
    %c0_i32 = arith.constant 0 : i32
    %c0_i32_0 = arith.constant 0 : i32
    return %arg0, %arg1, %c0_i32 : i32, i32, i32
  }
}

module attributes {stable_mosaic.version = 11 : i64} {
  func.func @kernel(%arg0: i32, %arg1: i32, %arg2: i32, %arg3: memref<1x64x16xbf16, #tpu.memory_space<vmem>>, %arg4: memref<1x16x64xbf16, #tpu.memory_space<vmem>>, %arg5: memref<1x64x128xbf16, #tpu.memory_space<vmem>>, %arg6: memref<1x64x128xf32, #tpu.memory_space<vmem>>, %arg7: memref<1x1xf32, #tpu.memory_space<smem>>, %arg8: memref<1x64x128xf32, #tpu.memory_space<vmem>>, %arg9: memref<64x1xf32, #tpu.memory_space<vmem>>, %arg10: memref<64x1xf32, #tpu.memory_space<vmem>>, %arg11: memref<64x128xf32, #tpu.memory_space<vmem>>) attributes {dimension_semantics = [#tpu.dimension_semantics<parallel>, #tpu.dimension_semantics<parallel>, #tpu.dimension_semantics<arbitrary>], iteration_bounds = array<i64: 2, 1, 1>, scalar_prefetch = 0 : i64, scratch_operands = 3 : i64, tpu.core_type = #tpu.core_type<tc>, window_params = [{transform_indices = @transform_0, window_bounds = array<i64: 1, 64, 16>}, {transform_indices = @transform_1, window_bounds = array<i64: 1, 16, 64>}, {transform_indices = @transform_2, window_bounds = array<i64: 1, 64, 128>}, {transform_indices = @transform_3, window_bounds = array<i64: 1, 64, 128>}, {transform_indices = @transform_4, window_bounds = array<i64: 1, 1>}, {transform_indices = @transform_5, window_bounds = array<i64: 1, 64, 128>}]} {
    %c0_i32 = arith.constant 0 : i32
    %0 = arith.cmpi eq, %arg2, %c0_i32 : i32
    %1 = arith.extui %0 : i1 to i32
    %c0_i32_0 = arith.constant 0 : i32
    %2 = arith.cmpi ne, %1, %c0_i32_0 : i32
    scf.if %2 {
      %cst_26 = arith.constant 0xFF800000 : f32
      %36 = vector.broadcast %cst_26 : f32 to vector<64x1xf32>
      %c0_27 = arith.constant 0 : index
      %c0_28 = arith.constant 0 : index
      %37 = vector.load %arg9[%c0_27, %c0_28] : memref<64x1xf32, #tpu.memory_space<vmem>>, vector<64x1xf32>
      tpu.vector_store %arg9[%c0_27, %c0_28], %36 {strides = array<i32>} : memref<64x1xf32, #tpu.memory_space<vmem>>, vector<64x1xf32>,
      %cst_29 = arith.constant 0.000000e+00 : f32
      %38 = vector.broadcast %cst_29 : f32 to vector<64x1xf32>
      %c0_30 = arith.constant 0 : index
      %c0_31 = arith.constant 0 : index
      %39 = vector.load %arg10[%c0_30, %c0_31] : memref<64x1xf32, #tpu.memory_space<vmem>>, vector<64x1xf32>
      tpu.vector_store %arg10[%c0_30, %c0_31], %38 {strides = array<i32>} : memref<64x1xf32, #tpu.memory_space<vmem>>, vector<64x1xf32>,
      %cst_32 = arith.constant 0.000000e+00 : f32
      %40 = vector.broadcast %cst_32 : f32 to vector<64x128xf32>
      %c0_33 = arith.constant 0 : index
      %c0_34 = arith.constant 0 : index
      %41 = vector.load %arg11[%c0_33, %c0_34] : memref<64x128xf32, #tpu.memory_space<vmem>>, vector<64x128xf32>
      tpu.vector_store %arg11[%c0_33, %c0_34], %40 {strides = array<i32>} : memref<64x128xf32, #tpu.memory_space<vmem>>, vector<64x128xf32>,
    } else {
    }
    %c0 = arith.constant 0 : index
    %c0_1 = arith.constant 0 : index
    %c0_2 = arith.constant 0 : index
    %3 = vector.load %arg3[%c0, %c0_1, %c0_2] : memref<1x64x16xbf16, #tpu.memory_space<vmem>>, vector<1x64x16xbf16>
    %4 = vector.shape_cast %3 : vector<1x64x16xbf16> to vector<64x16xbf16>
    %c0_3 = arith.constant 0 : index
    %c0_4 = arith.constant 0 : index
    %c0_5 = arith.constant 0 : index
    %5 = vector.load %arg4[%c0_3, %c0_4, %c0_5] : memref<1x16x64xbf16, #tpu.memory_space<vmem>>, vector<1x16x64xbf16>
    %6 = vector.shape_cast %5 : vector<1x16x64xbf16> to vector<16x64xbf16>
    %c0_6 = arith.constant 0 : index
    %c0_7 = arith.constant 0 : index
    %c0_8 = arith.constant 0 : index
    %7 = vector.load %arg5[%c0_6, %c0_7, %c0_8] : memref<1x64x128xbf16, #tpu.memory_space<vmem>>, vector<1x64x128xbf16>
    %8 = vector.shape_cast %7 : vector<1x64x128xbf16> to vector<64x128xbf16>
    %cst = arith.constant dense<0.000000e+00> : vector<64x64xf32>
    %9 = tpu.matmul %4, %6, %cst {dimension_numbers = #tpu.dot_dimension_numbers<[1], [0], [0], [1], [0, 0, 1, 1], [], []>} : vector<64x16xbf16>, vector<16x64xbf16>, vector<64x64xf32> -> vector<64x64xf32>
    %c0_9 = arith.constant 0 : index
    %c0_10 = arith.constant 0 : index
    %10 = vector.load %arg9[%c0_9, %c0_10] : memref<64x1xf32, #tpu.memory_space<vmem>>, vector<64x1xf32>
    %cst_11 = arith.constant dense<0xFF800000> : vector<64xf32>
    %11 = vector.multi_reduction <maximumf>, %9, %cst_11 [1] : vector<64x64xf32> to vector<64xf32>
    %12 = vector.shape_cast %11 : vector<64xf32> to vector<64x1xf32>
    %13 = arith.maximumf %10, %12 : vector<64x1xf32>
    %14 = arith.subf %10, %13 : vector<64x1xf32>
    %15 = math.exp %14 : vector<64x1xf32>
    %16 = vector.broadcast %13 : vector<64x1xf32> to vector<64x64xf32>
    %17 = arith.subf %9, %16 : vector<64x64xf32>
    %18 = math.exp %17 : vector<64x64xf32>
    %c0_12 = arith.constant 0 : index
    %c0_13 = arith.constant 0 : index
    %19 = vector.load %arg10[%c0_12, %c0_13] : memref<64x1xf32, #tpu.memory_space<vmem>>, vector<64x1xf32>
    %20 = arith.mulf %15, %19 : vector<64x1xf32>
    %cst_14 = arith.constant dense<0.000000e+00> : vector<64xf32>
    %21 = vector.multi_reduction <add>, %18, %cst_14 [1] : vector<64x64xf32> to vector<64xf32>
    %22 = vector.shape_cast %21 : vector<64xf32> to vector<64x1xf32>
    %23 = arith.addf %20, %22 : vector<64x1xf32>
    %c0_15 = arith.constant 0 : index
    %c0_16 = arith.constant 0 : index
    %24 = vector.load %arg10[%c0_15, %c0_16] : memref<64x1xf32, #tpu.memory_space<vmem>>, vector<64x1xf32>
    tpu.vector_store %arg10[%c0_15, %c0_16], %23 {strides = array<i32>} : memref<64x1xf32, #tpu.memory_space<vmem>>, vector<64x1xf32>,
    %c0_17 = arith.constant 0 : index
    %c0_18 = arith.constant 0 : index
    %25 = vector.load %arg11[%c0_17, %c0_18] : memref<64x128xf32, #tpu.memory_space<vmem>>, vector<64x128xf32>
    %26 = vector.broadcast %15 : vector<64x1xf32> to vector<64x128xf32>
    %27 = arith.mulf %26, %25 : vector<64x128xf32>
    %28 = arith.truncf %18 : vector<64x64xf32> to vector<64x64xbf16>
    %cst_19 = arith.constant dense<0.000000e+00> : vector<64x128xf32>
    %29 = tpu.matmul %28, %8, %cst_19 {dimension_numbers = #tpu.dot_dimension_numbers<[1], [0], [0], [1], [0, 0, 1, 1], [], []>} : vector<64x64xbf16>, vector<64x128xbf16>, vector<64x128xf32> -> vector<64x128xf32>
    %30 = arith.addf %27, %29 : vector<64x128xf32>
    %c0_20 = arith.constant 0 : index
    %c0_21 = arith.constant 0 : index
    %31 = vector.load %arg11[%c0_20, %c0_21] : memref<64x128xf32, #tpu.memory_space<vmem>>, vector<64x128xf32>
    tpu.vector_store %arg11[%c0_20, %c0_21], %30 {strides = array<i32>} : memref<64x128xf32, #tpu.memory_space<vmem>>, vector<64x128xf32>,
    %c0_22 = arith.constant 0 : index
    %c0_23 = arith.constant 0 : index
    %32 = vector.load %arg9[%c0_22, %c0_23] : memref<64x1xf32, #tpu.memory_space<vmem>>, vector<64x1xf32>
    tpu.vector_store %arg9[%c0_22, %c0_23], %13 {strides = array<i32>} : memref<64x1xf32, #tpu.memory_space<vmem>>, vector<64x1xf32>,
    %c0_i32_24 = arith.constant 0 : i32
    %33 = arith.cmpi eq, %arg2, %c0_i32_24 : i32
    %34 = arith.extui %33 : i1 to i32
    %c0_i32_25 = arith.constant 0 : i32
    %35 = arith.cmpi ne, %34, %c0_i32_25 : i32
    scf.if %35 {
      %c0_26 = arith.constant 0 : index
      %c0_27 = arith.constant 0 : index
      %36 = memref.load %arg7[%c0_26, %c0_27] : memref<1x1xf32, #tpu.memory_space<smem>>
      %c0_28 = arith.constant 0 : index
      %c0_29 = arith.constant 0 : index
      %37 = vector.load %arg11[%c0_28, %c0_29] : memref<64x128xf32, #tpu.memory_space<vmem>>, vector<64x128xf32>
      %c0_30 = arith.constant 0 : index
      %c0_31 = arith.constant 0 : index
      %38 = vector.load %arg10[%c0_30, %c0_31] : memref<64x1xf32, #tpu.memory_space<vmem>>, vector<64x1xf32>
      %39 = vector.broadcast %38 : vector<64x1xf32> to vector<64x128xf32>
      %40 = arith.divf %37, %39 : vector<64x128xf32>
      %41 = vector.broadcast %36 : f32 to vector<64x128xf32>
      %42 = arith.mulf %41, %40 : vector<64x128xf32>
      %c0_32 = arith.constant 0 : index
      %c0_33 = arith.constant 0 : index
      %c0_34 = arith.constant 0 : index
      %43 = vector.load %arg6[%c0_32, %c0_33, %c0_34] : memref<1x64x128xf32, #tpu.memory_space<vmem>>, vector<1x64x128xf32>
      %44 = vector.shape_cast %43 : vector<1x64x128xf32> to vector<64x128xf32>
      %45 = arith.addf %42, %44 : vector<64x128xf32>
      %c0_35 = arith.constant 0 : index
      %c0_36 = arith.constant 0 : index
      %c0_37 = arith.constant 0 : index
      %46 = vector.load %arg8[%c0_35, %c0_36, %c0_37] : memref<1x64x128xf32, #tpu.memory_space<vmem>>, vector<1x64x128xf32>
      %47 = vector.shape_cast %46 : vector<1x64x128xf32> to vector<64x128xf32>
      %48 = vector.shape_cast %45 : vector<64x128xf32> to vector<1x64x128xf32>
      tpu.vector_store %arg8[%c0_35, %c0_36, %c0_37], %48 {strides = array<i32>} : memref<1x64x128xf32, #tpu.memory_space<vmem>>, vector<1x64x128xf32>,
    } else {
    }
    return
  }
  func.func @transform_0(%arg0: i32, %arg1: i32, %arg2: i32) -> (i32, i32, i32) {
    %c0_i32 = arith.constant 0 : i32
    %c0_i32_0 = arith.constant 0 : i32
    return %arg0, %arg1, %c0_i32 : i32, i32, i32
  }
  func.func @transform_1(%arg0: i32, %arg1: i32, %arg2: i32) -> (i32, i32, i32) {
    %c0_i32 = arith.constant 0 : i32
    %c0_i32_0 = arith.constant 0 : i32
    return %arg0, %c0_i32, %arg2 : i32, i32, i32
  }
  func.func @transform_2(%arg0: i32, %arg1: i32, %arg2: i32) -> (i32, i32, i32) {
    %c0_i32 = arith.constant 0 : i32
    %c0_i32_0 = arith.constant 0 : i32
    return %arg0, %arg2, %c0_i32 : i32, i32, i32
  }
  func.func @transform_3(%arg0: i32, %arg1: i32, %arg2: i32) -> (i32, i32, i32) {
    %c0_i32 = arith.constant 0 : i32
    %c0_i32_0 = arith.constant 0 : i32
    return %arg0, %arg1, %c0_i32 : i32, i32, i32
  }
  func.func @transform_4(%arg0: i32, %arg1: i32, %arg2: i32) -> (i32, i32) {
    %c0_i32 = arith.constant 0 : i32
    %c0_i32_0 = arith.constant 0 : i32
    %c0_i32_1 = arith.constant 0 : i32
    return %c0_i32, %c0_i32_0 : i32, i32
  }
  func.func @transform_5(%arg0: i32, %arg1: i32, %arg2: i32) -> (i32, i32, i32) {
    %c0_i32 = arith.constant 0 : i32
    %c0_i32_0 = arith.constant 0 : i32
    return %arg0, %arg1, %c0_i32 : i32, i32, i32
  }
}

</mosaic_0001>

<llo_original>
// kernel: pam_forward.3
$region0: #{pam_forward.3}
  #allocation0 [shape = 'u32[]', space=smem, size = 0x4, offset = 0x4, fixed_abs, tag = 'smem constant byte address 0x4 - core index']
  #allocation1 [shape = 'u32[72,128]{1,0:T(1,128)}', space=vmem, size = 0x9000, scoped, tag = 'internal scratch']
  #allocation2 [shape = 'f32[64,1]{1,0:T(8,128)}', space=vmem, size = 0x8000, scoped, tag = 'scratch operand']
  #allocation3 [shape = 'f32[64,1]{1,0:T(8,128)}', space=vmem, size = 0x8000, scoped, tag = 'scratch operand']
  #allocation4 [shape = 'f32[64,128]{1,0:T(8,128)}', space=vmem, size = 0x8000, scoped, tag = 'scratch operand']
  #allocation5 [shape = 'f32[1,1]{1,0:T(1,128)S(6)}', space=smem, size = 0x200, scoped, tag = 'scoped memory for pam_forward.3']
  %s0 = inlined_call_operand.vmem [shape: bf16[2,64,16], index: 0, kind: input, shape index: {}]
  %s1 = inlined_call_operand.vmem [shape: bf16[2,16,64], index: 1, kind: input, shape index: {}]
  %s2 = inlined_call_operand.vmem [shape: bf16[2,64,128], index: 2, kind: input, shape index: {}]
  %s3 = inlined_call_operand.vmem [shape: f32[2,64,128], index: 3, kind: input, shape index: {}, may-alias: {3,5}]
  %s4 = inlined_call_operand.<no memory space> [shape: f32[1,1], index: 4, kind: input, shape index: {}]
  %s5 = inlined_call_operand.vmem [shape: f32[2,64,128], index: 5, kind: output, shape index: {}, may-alias: {3,5}]
  %s6 = sld [smem:[#allocation0]]
  $region61: #{pam_forward.3} parent=0
    _
  %s8 = ssub.s32 1, %s6
  %s9 = scalar_select 0, %s8, %s6
  %10 = sst [smem:[#allocation5]] %s4
  loop: start=0, step=1, limit=4
  $region2: #{pam_forward.3} parent=0 // loop_pre_header
    _
  $region3: #{pam_forward.3} parent=0 // loop_header
    %s12 = sphi 0, %s16
    %p13 = scmp.ge.s32.totalorder %s12, 4
    %s19 = sphi 0, %s38
    %s20 = sphi 0, %s34
    %s21 = sphi 0, %s30
    %s22 = sphi 0, %s19
    %s23 = sphi 0, %s20
    %s24 = sphi 0, %s21
    %s25 = sphi 0, %s22
    %s26 = sphi 0, %s23
    %s27 = sphi 0, %s24
    %s43 = sphi 0, %s45
    %s46 = sphi 0, %s43
    %s47 = sphi 0, %s46
    %s63 = sphi 0, %s47
    %s71 = sphi 0, %s73
    %s74 = sphi 0, %s71
    %s75 = sphi 0, %s74
    %s91 = sphi 0, %s75
    %s99 = sphi 0, %s101
    %s102 = sphi 0, %s99
    %s103 = sphi 0, %s102
    %s119 = sphi 0, %s103
    %s127 = sphi 0, %s129
    %s130 = sphi 0, %s127
    %s131 = sphi 0, %s130
    %s147 = sphi 0, %s131
    %s151 = sphi 0, %s151
    %s153 = sphi 0, %s151
    %s154 = sphi 0, %s153
    %s168 = sphi 0, %s154
    %s176 = sphi 0, %s178
    %s179 = sphi 0, %s176
    %s180 = sphi 0, %s179
    %s196 = sphi 0, %s180
  $region4: #{pam_forward.3} parent=0 // loop_header_branch
    %15 = sbr.rel (%p13) target = $region8
  $region5: #{pam_forward.3} parent=0 // loop_body
    %s17 = ssub.s32 %s12, 1
    %s18 = ssub.s32 %s12, 2
    %s28 = sadd.s32 1, %s21
    %p29 = scmp.ge.s32.totalorder %s28, 1
    %s30 = scalar_select %p29, 0, %s28
    %s31 = sadd.s32 1, %s20
    %s32 = scalar_select %p29, %s31, %s20
    %p33 = scmp.ge.s32.totalorder %s32, 1
    %s34 = scalar_select %p33, 0, %s32
    %s35 = sadd.s32 1, %s19
    %s36 = scalar_select %p33, %s35, %s19
    %p37 = scmp.ge.s32.totalorder %s36, 2
    %s38 = scalar_select %p37, 0, %s36
    %s39 = ssub.s32 %s19, %s38
    %s40 = ssub.s32 %s20, %s34
    %s41 = sor.u32 %s39, %s40
    %p42 = scmp.eq.s32.totalorder %s41, 0
    %s44 = sadd.s32 %s43, 1
    %s45 = scalar_select %p42, %s43, %s44
    %p48 = pneg %p42
    %p49 = scmp.eq.s32.totalorder %s12, 1
    %p50 = por %p48, %p49
    %p51 = scmp.ne.s32.totalorder %s43, %s46
    %p52 = scmp.eq.s32.totalorder %s12, 0
    %p53 = por %p51, %p52
    %p54 = scmp.ne.s32.totalorder %s43, %s46
    %p55 = scmp.eq.s32.totalorder %s17, 1
    %p56 = por %p54, %p55
    %p57 = scmp.ne.s32.totalorder %s46, %s47
    %p58 = scmp.eq.s32.totalorder %s17, 0
    %p59 = por %p57, %p58
    %p60 = scmp.ne.s32.totalorder %s46, %s47
    %p61 = scmp.eq.s32.totalorder %s18, 1
    %p62 = por %p60, %p61
    %p64 = scmp.ne.s32.totalorder %s47, %s63
    %p65 = scmp.eq.s32.totalorder %s18, 0
    %p66 = por %p64, %p65
    %s67 = ssub.s32 %s19, %s38
    %s68 = ssub.s32 %s21, %s30
    %s69 = sor.u32 %s67, %s68
    %p70 = scmp.eq.s32.totalorder %s69, 0
    %s72 = sadd.s32 %s71, 1
    %s73 = scalar_select %p70, %s71, %s72
    %p76 = pneg %p70
    %p77 = scmp.eq.s32.totalorder %s12, 1
    %p78 = por %p76, %p77
    %p79 = scmp.ne.s32.totalorder %s71, %s74
    %p80 = scmp.eq.s32.totalorder %s12, 0
    %p81 = por %p79, %p80
    %p82 = scmp.ne.s32.totalorder %s71, %s74
    %p83 = scmp.eq.s32.totalorder %s17, 1
    %p84 = por %p82, %p83
    %p85 = scmp.ne.s32.totalorder %s74, %s75
    %p86 = scmp.eq.s32.totalorder %s17, 0
    %p87 = por %p85, %p86
    %p88 = scmp.ne.s32.totalorder %s74, %s75
    %p89 = scmp.eq.s32.totalorder %s18, 1
    %p90 = por %p88, %p89
    %p92 = scmp.ne.s32.totalorder %s75, %s91
    %p93 = scmp.eq.s32.totalorder %s18, 0
    %p94 = por %p92, %p93
    %s95 = ssub.s32 %s19, %s38
    %s96 = ssub.s32 %s21, %s30
    %s97 = sor.u32 %s95, %s96
    %p98 = scmp.eq.s32.totalorder %s97, 0
    %s100 = sadd.s32 %s99, 1
    %s101 = scalar_select %p98, %s99, %s100
    %p104 = pneg %p98
    %p105 = scmp.eq.s32.totalorder %s12, 1
    %p106 = por %p104, %p105
    %p107 = scmp.ne.s32.totalorder %s99, %s102
    %p108 = scmp.eq.s32.totalorder %s12, 0
    %p109 = por %p107, %p108
    %p110 = scmp.ne.s32.totalorder %s99, %s102
    %p111 = scmp.eq.s32.totalorder %s17, 1
    %p112 = por %p110, %p111
    %p113 = scmp.ne.s32.totalorder %s102, %s103
    %p114 = scmp.eq.s32.totalorder %s17, 0
    %p115 = por %p113, %p114
    %p116 = scmp.ne.s32.totalorder %s102, %s103
    %p117 = scmp.eq.s32.totalorder %s18, 1
    %p118 = por %p116, %p117
    %p120 = scmp.ne.s32.totalorder %s103, %s119
    %p121 = scmp.eq.s32.totalorder %s18, 0
    %p122 = por %p120, %p121
    %s123 = ssub.s32 %s19, %s38
    %s124 = ssub.s32 %s20, %s34
    %s125 = sor.u32 %s123, %s124
    %p126 = scmp.eq.s32.totalorder %s125, 0
    %s128 = sadd.s32 %s127, 1
    %s129 = scalar_select %p126, %s127, %s128
    %p132 = pneg %p126
    %p133 = scmp.eq.s32.totalorder %s12, 1
    %p134 = por %p132, %p133
    %p135 = scmp.ne.s32.totalorder %s127, %s130
    %p136 = scmp.eq.s32.totalorder %s12, 0
    %p137 = por %p135, %p136
    %p138 = scmp.ne.s32.totalorder %s127, %s130
    %p139 = scmp.eq.s32.totalorder %s17, 1
    %p140 = por %p138, %p139
    %p141 = scmp.ne.s32.totalorder %s130, %s131
    %p142 = scmp.eq.s32.totalorder %s17, 0
    %p143 = por %p141, %p142
    %p144 = scmp.ne.s32.totalorder %s130, %s131
    %p145 = scmp.eq.s32.totalorder %s18, 1
    %p146 = por %p144, %p145
    %p148 = scmp.ne.s32.totalorder %s131, %s147
    %p149 = scmp.eq.s32.totalorder %s18, 0
    %p150 = por %p148, %p149
    %s152 = sadd.s32 %s151, 1
    %p155 = scmp.eq.s32.totalorder %s12, 1
    %p156 = scmp.ne.s32.totalorder %s151, %s153
    %p157 = scmp.eq.s32.totalorder %s12, 0
    %p158 = por %p156, %p157
    %p159 = scmp.ne.s32.totalorder %s151, %s153
    %p160 = scmp.eq.s32.totalorder %s17, 1
    %p161 = por %p159, %p160
    %p162 = scmp.ne.s32.totalorder %s153, %s154
    %p163 = scmp.eq.s32.totalorder %s17, 0
    %p164 = por %p162, %p163
    %p165 = scmp.ne.s32.totalorder %s153, %s154
    %p166 = scmp.eq.s32.totalorder %s18, 1
    %p167 = por %p165, %p166
    %p169 = scmp.ne.s32.totalorder %s154, %s168
    %p170 = scmp.eq.s32.totalorder %s18, 0
    %p171 = por %p169, %p170
    %s172 = ssub.s32 %s19, %s38
    %s173 = ssub.s32 %s20, %s34
    %s174 = sor.u32 %s172, %s173
    %p175 = scmp.eq.s32.totalorder %s174, 0
    %s177 = sadd.s32 %s176, 1
    %s178 = scalar_select %p175, %s176, %s177
    %p181 = pneg %p175
    %p182 = scmp.eq.s32.totalorder %s12, 1
    %p183 = por %p181, %p182
    %p184 = scmp.ne.s32.totalorder %s176, %s179
    %p185 = scmp.eq.s32.totalorder %s12, 0
    %p186 = por %p184, %p185
    %p187 = scmp.ne.s32.totalorder %s176, %s179
    %p188 = scmp.eq.s32.totalorder %s17, 1
    %p189 = por %p187, %p188
    %p190 = scmp.ne.s32.totalorder %s179, %s180
    %p191 = scmp.eq.s32.totalorder %s17, 0
    %p192 = por %p190, %p191
    %p193 = scmp.ne.s32.totalorder %s179, %s180
    %p194 = scmp.eq.s32.totalorder %s18, 1
    %p195 = por %p193, %p194
    %p197 = scmp.ne.s32.totalorder %s180, %s196
    %p198 = scmp.eq.s32.totalorder %s18, 0
    %p199 = por %p197, %p198
    %p200 = scmp.le.s32.totalorder 1, %s12
    %p201 = scmp.lt.s32.totalorder %s12, 3
    %p202 = pnand %p200, %p201
    %p203 = pneg %p202
    // Predicated region
    $region9: #{pam_forward.3} parent=5 // pred_check
      _
    $region10: #{pam_forward.3} parent=5 // pred_check_branch
      %205 = sbr.rel (%p202) target = $region12
    $region11: #{pam_forward.3} parent=5 // pred_region
      %s206 = ssub.s32 %s12, 1
      // Predicated region
      $region13: #{pam_forward.3} parent=11 // pred_check
        %p207 = pneg %p164
      $region14: #{pam_forward.3} parent=11 // pred_check_branch
        %209 = sbr.rel (%p207) target = $region16
      $region15: #{pam_forward.3} parent=11 // pred_region
        _
      $region16: #{pam_forward.3} parent=11 // pred_fallthru
        _
    $region12: #{pam_forward.3} parent=5 // pred_fallthru
      _
    %p210 = scmp.lt.s32.totalorder %s12, 2
    // Predicated region
    $region17: #{pam_forward.3} parent=5 // pred_check
      %p211 = pneg %p210
    $region18: #{pam_forward.3} parent=5 // pred_check_branch
      %213 = sbr.rel (%p211) target = $region20
    $region19: #{pam_forward.3} parent=5 // pred_region
      // Predicated region
      $region21: #{pam_forward.3} parent=19 // pred_check
        %p214 = pneg %p53
      $region22: #{pam_forward.3} parent=19 // pred_check_branch
        %216 = sbr.rel (%p214) target = $region24
      $region23: #{pam_forward.3} parent=19 // pred_region
        %s217 = smul.u32 8, %s20
        %p218 = scmp.lt.s32.totalorder %s19, 1
        %s219 = scalar_select %p218, %s19, 1
        %p220 = scmp.lt.s32.totalorder %s217, 7
        %s221 = scalar_select %p220, %s217, 7
        %s222 = smul.addr %s219, 8
        %s223 = sadd.s32 %s221, %s222
        %s224 = smul.addr %s223, 4
        %s225 = scalar_lea.vmem %s0, %s224
        %s226 = smul.u32 8, %s20
      $region24: #{pam_forward.3} parent=19 // pred_fallthru
        _
      // Predicated region
      $region25: #{pam_forward.3} parent=19 // pred_check
        %p227 = pneg %p81
      $region26: #{pam_forward.3} parent=19 // pred_check_branch
        %229 = sbr.rel (%p227) target = $region28
      $region27: #{pam_forward.3} parent=19 // pred_region
        %p230 = scmp.lt.s32.totalorder %s19, 1
        %s231 = scalar_select %p230, %s19, 1
        %p232 = scmp.lt.s32.totalorder %s21, 0
        %s233 = scalar_select %p232, %s21, 0
        %s234 = smul.addr %s231, 2
        %s235 = sadd.s32 %s233, %s234
        %s236 = smul.addr %s235, 4
        %s237 = scalar_lea.vmem %s1, %s236
      $region28: #{pam_forward.3} parent=19 // pred_fallthru
        _
      // Predicated region
      $region29: #{pam_forward.3} parent=19 // pred_check
        %p238 = pneg %p109
      $region30: #{pam_forward.3} parent=19 // pred_check_branch
        %240 = sbr.rel (%p238) target = $region32
      $region31: #{pam_forward.3} parent=19 // pred_region
        %s241 = smul.u32 8, %s21
        %p242 = scmp.lt.s32.totalorder %s19, 1
        %s243 = scalar_select %p242, %s19, 1
        %p244 = scmp.lt.s32.totalorder %s241, 7
        %s245 = scalar_select %p244, %s241, 7
        %s246 = smul.addr %s243, 8
        %s247 = sadd.s32 %s245, %s246
        %s248 = smul.addr %s247, 4
        %s249 = scalar_lea.vmem %s2, %s248
        %s250 = smul.u32 8, %s21
      $region32: #{pam_forward.3} parent=19 // pred_fallthru
        _
      // Predicated region
      $region33: #{pam_forward.3} parent=19 // pred_check
        %p251 = pneg %p137
      $region34: #{pam_forward.3} parent=19 // pred_check_branch
        %253 = sbr.rel (%p251) target = $region36
      $region35: #{pam_forward.3} parent=19 // pred_region
        %s254 = smul.u32 8, %s20
        %p255 = scmp.lt.s32.totalorder %s19, 1
        %s256 = scalar_select %p255, %s19, 1
        %p257 = scmp.lt.s32.totalorder %s254, 7
        %s258 = scalar_select %p257, %s254, 7
        %s259 = smul.addr %s256, 8
        %s260 = sadd.s32 %s258, %s259
        %s261 = smul.addr %s260, 8
        %s262 = scalar_lea.vmem %s3, %s261
        %s263 = smul.u32 8, %s20
      $region36: #{pam_forward.3} parent=19 // pred_fallthru
        _
    $region20: #{pam_forward.3} parent=5 // pred_fallthru
      _
    %p264 = scmp.le.s32.totalorder 1, %s12
    %p265 = scmp.lt.s32.totalorder %s12, 3
    %p266 = pnand %p264, %p265
    %p267 = pneg %p266
    // Predicated region
    $region37: #{pam_forward.3} parent=5 // pred_check
      _
    $region38: #{pam_forward.3} parent=5 // pred_check_branch
      %269 = sbr.rel (%p266) target = $region40
    $region39: #{pam_forward.3} parent=5 // pred_region
      %s270 = ssub.s32 %s12, 1
      %s271 = smul.u32 8, %s23
      %p272 = scmp.lt.s32.totalorder %s22, 1
      %s273 = scalar_select %p272, %s22, 1
      %p274 = scmp.lt.s32.totalorder %s271, 7
      %s275 = scalar_select %p274, %s271, 7
      %s276 = smul.addr %s273, 8
      %s277 = sadd.s32 %s275, %s276
      %s278 = smul.addr %s277, 4
      %s279 = scalar_lea.vmem %s0, %s278
      %p280 = pneg %p59
      %p281 = pneg %p56
      %p282 = scmp.lt.s32.totalorder %s22, 1
      %s283 = scalar_select %p282, %s22, 1
      %p284 = scmp.lt.s32.totalorder %s24, 0
      %s285 = scalar_select %p284, %s24, 0
      %s286 = smul.addr %s283, 2
      %s287 = sadd.s32 %s285, %s286
      %s288 = smul.addr %s287, 4
      %s289 = scalar_lea.vmem %s1, %s288
      %p290 = pneg %p87
      %p291 = pneg %p84
      %s292 = smul.u32 8, %s24
      %p293 = scmp.lt.s32.totalorder %s22, 1
      %s294 = scalar_select %p293, %s22, 1
      %p295 = scmp.lt.s32.totalorder %s292, 7
      %s296 = scalar_select %p295, %s292, 7
      %s297 = smul.addr %s294, 8
      %s298 = sadd.s32 %s296, %s297
      %s299 = smul.addr %s298, 4
      %s300 = scalar_lea.vmem %s2, %s299
      %p301 = pneg %p115
      %p302 = pneg %p112
      %s303 = smul.u32 8, %s23
      %p304 = scmp.lt.s32.totalorder %s22, 1
      %s305 = scalar_select %p304, %s22, 1
      %p306 = scmp.lt.s32.totalorder %s303, 7
      %s307 = scalar_select %p306, %s303, 7
      %s308 = smul.addr %s305, 8
      %s309 = sadd.s32 %s307, %s308
      %s310 = smul.addr %s309, 8
      %s311 = scalar_lea.vmem %s3, %s310
      %p312 = pneg %p143
      %p313 = pneg %p140
      %p314 = pneg %p164
      %p315 = pneg %p161
      %p316 = pneg %p192
      %p317 = pneg %p189
      %s318 = smul.u32 8, %s23
      %p319 = scmp.lt.s32.totalorder %s22, 1
      %s320 = scalar_select %p319, %s22, 1
      %p321 = scmp.lt.s32.totalorder %s318, 7
      %s322 = scalar_select %p321, %s318, 7
      %s323 = smul.addr %s320, 8
      %s324 = sadd.s32 %s322, %s323
      %s325 = smul.addr %s324, 8
      %s326 = scalar_lea.vmem %s5, %s325
      %s327 = smul.u32 8, %s23
      %p328 = scmp.lt.s32.totalorder %s22, 1
      %s329 = scalar_select %p328, %s22, 1
      %p330 = scmp.lt.s32.totalorder %s327, 7
      %s331 = scalar_select %p330, %s327, 7
      %s332 = smul.addr %s329, 8
      %s333 = sadd.s32 %s331, %s332
      %s334 = smul.addr %s333, 4
      %s335 = scalar_lea.vmem %s0, %s334
      %s336 = smul.u32 8, %s23
      %p337 = scmp.lt.s32.totalorder %s22, 1
      %s338 = scalar_select %p337, %s22, 1
      %p339 = scmp.lt.s32.totalorder %s24, 0
      %s340 = scalar_select %p339, %s24, 0
      %s341 = smul.addr %s338, 2
      %s342 = sadd.s32 %s340, %s341
      %s343 = smul.addr %s342, 4
      %s344 = scalar_lea.vmem %s1, %s343
      %s345 = smul.u32 8, %s24
      %p346 = scmp.lt.s32.totalorder %s22, 1
      %s347 = scalar_select %p346, %s22, 1
      %p348 = scmp.lt.s32.totalorder %s345, 7
      %s349 = scalar_select %p348, %s345, 7
      %s350 = smul.addr %s347, 8
      %s351 = sadd.s32 %s349, %s350
      %s352 = smul.addr %s351, 4
      %s353 = scalar_lea.vmem %s2, %s352
      %s354 = smul.u32 8, %s24
      %s355 = smul.u32 8, %s23
      %p356 = scmp.lt.s32.totalorder %s22, 1
      %s357 = scalar_select %p356, %s22, 1
      %p358 = scmp.lt.s32.totalorder %s355, 7
      %s359 = scalar_select %p358, %s355, 7
      %s360 = smul.addr %s357, 8
      %s361 = sadd.s32 %s359, %s360
      %s362 = smul.addr %s361, 8
      %s363 = scalar_lea.vmem %s3, %s362
      %s364 = smul.u32 8, %s23
      %s365 = smul.u32 8, %s23
      %p366 = scmp.lt.s32.totalorder %s22, 1
      %s367 = scalar_select %p366, %s22, 1
      %p368 = scmp.lt.s32.totalorder %s365, 7
      %s369 = scalar_select %p368, %s365, 7
      %s370 = smul.addr %s367, 8
      %s371 = sadd.s32 %s369, %s370
      %s372 = smul.addr %s371, 8
      %s373 = scalar_lea.vmem %s5, %s372
      %s374 = smul.u32 8, %s23
      %p376 = scmp.eq.s32.totalorder %s24, 0
      // Predicated region
      $region41: #{pam_forward.3} parent=39 // pred_check
        %p377 = pneg %p376
      $region42: #{pam_forward.3} parent=39 // pred_check_branch
        %379 = sbr.rel (%p377) target = $region44
      $region43: #{pam_forward.3} parent=39 // pred_region
        %vm380 = vcmask 7168
        %381 = vst.msk [vmem:[#allocation2] sm:$0xff] %vm380, -inf
        %382 = vst.msk [vmem:[#allocation2 + $0x8] sm:$0xff] %vm380, -inf
        %383 = vst.msk [vmem:[#allocation2 + $0x10] sm:$0xff] %vm380, -inf
        %384 = vst.msk [vmem:[#allocation2 + $0x18] sm:$0xff] %vm380, -inf
        %385 = vst.msk [vmem:[#allocation2 + $0x20] sm:$0xff] %vm380, -inf
        %386 = vst.msk [vmem:[#allocation2 + $0x28] sm:$0xff] %vm380, -inf
        %387 = vst.msk [vmem:[#allocation2 + $0x30] sm:$0xff] %vm380, -inf
        %388 = vst.msk [vmem:[#allocation2 + $0x38] sm:$0xff] %vm380, -inf
        %389 = vst.msk [vmem:[#allocation3] sm:$0xff] %vm380, 0.0
        %390 = vst.msk [vmem:[#allocation3 + $0x8] sm:$0xff] %vm380, 0.0
        %391 = vst.msk [vmem:[#allocation3 + $0x10] sm:$0xff] %vm380, 0.0
        %392 = vst.msk [vmem:[#allocation3 + $0x18] sm:$0xff] %vm380, 0.0
        %393 = vst.msk [vmem:[#allocation3 + $0x20] sm:$0xff] %vm380, 0.0
        %394 = vst.msk [vmem:[#allocation3 + $0x28] sm:$0xff] %vm380, 0.0
        %395 = vst.msk [vmem:[#allocation3 + $0x30] sm:$0xff] %vm380, 0.0
        %396 = vst.msk [vmem:[#allocation3 + $0x38] sm:$0xff] %vm380, 0.0
        %397 = vst [vmem:[#allocation4] sm:$0xff] 0.0
        %398 = vst [vmem:[#allocation4 + $0x8] sm:$0xff] 0.0
        %399 = vst [vmem:[#allocation4 + $0x10] sm:$0xff] 0.0
        %400 = vst [vmem:[#allocation4 + $0x18] sm:$0xff] 0.0
        %401 = vst [vmem:[#allocation4 + $0x20] sm:$0xff] 0.0
        %402 = vst [vmem:[#allocation4 + $0x28] sm:$0xff] 0.0
        %403 = vst [vmem:[#allocation4 + $0x30] sm:$0xff] 0.0
        %404 = vst [vmem:[#allocation4 + $0x38] sm:$0xff] 0.0
      $region44: #{pam_forward.3} parent=39 // pred_fallthru
        _
      %v405 = vld [vmem:[%s335] sm:$0xf]
      %v406 = vld [vmem:[%s335 + $0x4] sm:$0xf]
      %v407 = vld [vmem:[%s335 + $0x8] sm:$0xf]
      %v408 = vld [vmem:[%s335 + $0xc] sm:$0xf]
      %v409 = vld [vmem:[%s335 + $0x10] sm:$0xf]
      %v410 = vld [vmem:[%s335 + $0x14] sm:$0xf]
      %v411 = vld [vmem:[%s335 + $0x18] sm:$0xf]
      %v412 = vld [vmem:[%s335 + $0x1c] sm:$0xf]
      %v413 = vld [vmem:[%s344] sm:$0xf]
      %v414 = vld [vmem:[%s344 + $0x4] sm:$0xf]
      %v415 = vld [vmem:[%s353] sm:$0xf]
      %v416 = vld [vmem:[%s353 + $0x4] sm:$0xf]
      %v417 = vld [vmem:[%s353 + $0x8] sm:$0xf]
      %v418 = vld [vmem:[%s353 + $0xc] sm:$0xf]
      %v419 = vld [vmem:[%s353 + $0x10] sm:$0xf]
      %v420 = vld [vmem:[%s353 + $0x14] sm:$0xf]
      %v421 = vld [vmem:[%s353 + $0x18] sm:$0xf]
      %v422 = vld [vmem:[%s353 + $0x1c] sm:$0xf]
      %v431 = vunpack.c.l.b16 %v405
      %v432 = vunpack.c.l.b16 %v406
      %v433 = vunpack.c.l.b16 %v407
      %v434 = vunpack.c.l.b16 %v408
      %v435 = vunpack.c.l.b16 %v409
      %v436 = vunpack.c.l.b16 %v410
      %v437 = vunpack.c.l.b16 %v411
      %v438 = vunpack.c.l.b16 %v412
      %v439 = vpack.c.b16 %v432, %v431
      %v440 = vpack.c.b16 %v434, %v433
      %v441 = vpack.c.b16 %v436, %v435
      %v442 = vpack.c.b16 %v438, %v437
      %v445 = vunpack.c.l.b16 %v413
      %v446 = vunpack.c.l.b16 %v414
      %v447 = vpack.c.b16 %v446, %v445
      %vm449 = vcmask 130048
      %v451 = vsel %vm449, %v439, 0
      %v454 = vsel %vm449, %v440, 0
      %v457 = vsel %vm449, %v441, 0
      %v460 = vsel %vm449, %v442, 0
      %462 = vmatpush.bf16.msra.mxu0 0
      %463 = vmatpush.bf16.msra.mxu0 0
      %464 = vmatpush.bf16.msra.mxu0 0
      %465 = vmatpush.bf16.msra.mxu0 0
      %466 = vmatpush.bf16.msra.mxu0 0
      %467 = vmatpush.bf16.msra.mxu0 0
      %468 = vmatpush.bf16.msra.mxu0 0
      %469 = vmatpush.bf16.msra.mxu0 %v447
      %470 = vmatmul.bf16.gmra.mxu0 %v451
      %v471 = vpop.f32.mrf.mxu0
      %v472 = vadd.f32 0.0, %v471
      %v473 = vpop.f32.mrf.mxu0
      %v474 = vadd.f32 0.0, %v473
      %475 = vmatmul.bf16.gmra.mxu0 %v454
      %v476 = vpop.f32.mrf.mxu0
      %v477 = vadd.f32 0.0, %v476
      %v478 = vpop.f32.mrf.mxu0
      %v479 = vadd.f32 0.0, %v478
      %480 = vmatmul.bf16.gmra.mxu0 %v457
      %v481 = vpop.f32.mrf.mxu0
      %v482 = vadd.f32 0.0, %v481
      %v483 = vpop.f32.mrf.mxu0
      %v484 = vadd.f32 0.0, %v483
      %485 = vmatmul.bf16.gmra.mxu0 %v460
      %v486 = vpop.f32.mrf.mxu0
      %v487 = vadd.f32 0.0, %v486
      %v488 = vpop.f32.mrf.mxu0
      %v489 = vadd.f32 0.0, %v488
      %490 = vdwg.mxu0
      %v491 = vld [vmem:[#allocation2] sm:$0xff]
      %v492 = vld [vmem:[#allocation2 + $0x8] sm:$0xff]
      %v493 = vld [vmem:[#allocation2 + $0x10] sm:$0xff]
      %v494 = vld [vmem:[#allocation2 + $0x18] sm:$0xff]
      %v495 = vld [vmem:[#allocation2 + $0x20] sm:$0xff]
      %v496 = vld [vmem:[#allocation2 + $0x28] sm:$0xff]
      %v497 = vld [vmem:[#allocation2 + $0x30] sm:$0xff]
      %v498 = vld [vmem:[#allocation2 + $0x38] sm:$0xff]
      %vm499 = vcmask 523264
      %v500 = vsel %vm499, %v472, -inf
      %501 = vmax.xlane.f32.xlu0 %v500
      %v502 = vpop.xlane.xlu0 %501
      %v503 = vsel %vm499, %v474, -inf
      %504 = vmax.xlane.f32.xlu0 %v503
      %v505 = vpop.xlane.xlu0 %504
      %v506 = vsel %vm499, %v477, -inf
      %507 = vmax.xlane.f32.xlu0 %v506
      %v508 = vpop.xlane.xlu0 %507
      %v509 = vsel %vm499, %v479, -inf
      %510 = vmax.xlane.f32.xlu0 %v509
      %v511 = vpop.xlane.xlu0 %510
      %v512 = vsel %vm499, %v482, -inf
      %513 = vmax.xlane.f32.xlu0 %v512
      %v514 = vpop.xlane.xlu0 %513
      %v515 = vsel %vm499, %v484, -inf
      %516 = vmax.xlane.f32.xlu0 %v515
      %v517 = vpop.xlane.xlu0 %516
      %v518 = vsel %vm499, %v487, -inf
      %519 = vmax.xlane.f32.xlu0 %v518
      %v520 = vpop.xlane.xlu0 %519
      %v521 = vsel %vm499, %v489, -inf
      %522 = vmax.xlane.f32.xlu0 %v521
      %v523 = vpop.xlane.xlu0 %522
      %v524 = vmax.f32 %v491, %v502
      %v525 = vmax.f32 %v492, %v505
      %v526 = vmax.f32 %v493, %v508
      %v527 = vmax.f32 %v494, %v511
      %v528 = vmax.f32 %v495, %v514
      %v529 = vmax.f32 %v496, %v517
      %v530 = vmax.f32 %v497, %v520
      %v531 = vmax.f32 %v498, %v523
      %v532 = vsub.f32 %v491, %v524
      %v533 = vsub.f32 %v492, %v525
      %v534 = vsub.f32 %v493, %v526
      %v535 = vsub.f32 %v494, %v527
      %v536 = vsub.f32 %v495, %v528
      %v537 = vsub.f32 %v496, %v529
      %v538 = vsub.f32 %v497, %v530
      %v539 = vsub.f32 %v498, %v531
      %v540 = vmul.f32 %v532, 1.442695
      %v541 = vpow.pop %v540
      %v542 = vmul.f32 %v533, 1.442695
      %v543 = vpow.pop %v542
      %v544 = vmul.f32 %v534, 1.442695
      %v545 = vpow.pop %v544
      %v546 = vmul.f32 %v535, 1.442695
      %v547 = vpow.pop %v546
      %v548 = vmul.f32 %v536, 1.442695
      %v549 = vpow.pop %v548
      %v550 = vmul.f32 %v537, 1.442695
      %v551 = vpow.pop %v550
      %v552 = vmul.f32 %v538, 1.442695
      %v553 = vpow.pop %v552
      %v554 = vmul.f32 %v539, 1.442695
      %v555 = vpow.pop %v554
      %557 = vset.pattern.permute.xlu0 0
      %558 = vperm.xlu0 %557, %v524
      %v559 = vpop.permute.xlu0 %558
      %562 = vset.pattern.permute.xlu0 0
      %563 = vperm.xlu0 %562, %v525
      %v564 = vpop.permute.xlu0 %563
      %567 = vset.pattern.permute.xlu0 0
      %568 = vperm.xlu0 %567, %v526
      %v569 = vpop.permute.xlu0 %568
      %572 = vset.pattern.permute.xlu0 0
      %573 = vperm.xlu0 %572, %v527
      %v574 = vpop.permute.xlu0 %573
      %577 = vset.pattern.permute.xlu0 0
      %578 = vperm.xlu0 %577, %v528
      %v579 = vpop.permute.xlu0 %578
      %582 = vset.pattern.permute.xlu0 0
      %583 = vperm.xlu0 %582, %v529
      %v584 = vpop.permute.xlu0 %583
      %587 = vset.pattern.permute.xlu0 0
      %588 = vperm.xlu0 %587, %v530
      %v589 = vpop.permute.xlu0 %588
      %592 = vset.pattern.permute.xlu0 0
      %593 = vperm.xlu0 %592, %v531
      %v594 = vpop.permute.xlu0 %593
      %v596 = vsub.f32 %v472, %v559
      %v597 = vsub.f32 %v474, %v564
      %v598 = vsub.f32 %v477, %v569
      %v599 = vsub.f32 %v479, %v574
      %v600 = vsub.f32 %v482, %v579
      %v601 = vsub.f32 %v484, %v584
      %v602 = vsub.f32 %v487, %v589
      %v603 = vsub.f32 %v489, %v594
      %v604 = vmul.f32 %v596, 1.442695
      %v605 = vpow.pop %v604
      %v606 = vmul.f32 %v597, 1.442695
      %v607 = vpow.pop %v606
      %v608 = vmul.f32 %v598, 1.442695
      %v609 = vpow.pop %v608
      %v610 = vmul.f32 %v599, 1.442695
      %v611 = vpow.pop %v610
      %v612 = vmul.f32 %v600, 1.442695
      %v613 = vpow.pop %v612
      %v614 = vmul.f32 %v601, 1.442695
      %v615 = vpow.pop %v614
      %v616 = vmul.f32 %v602, 1.442695
      %v617 = vpow.pop %v616
      %v618 = vmul.f32 %v603, 1.442695
      %v619 = vpow.pop %v618
      %v620 = vld [vmem:[#allocation3] sm:$0xff]
      %v621 = vld [vmem:[#allocation3 + $0x8] sm:$0xff]
      %v622 = vld [vmem:[#allocation3 + $0x10] sm:$0xff]
      %v623 = vld [vmem:[#allocation3 + $0x18] sm:$0xff]
      %v624 = vld [vmem:[#allocation3 + $0x20] sm:$0xff]
      %v625 = vld [vmem:[#allocation3 + $0x28] sm:$0xff]
      %v626 = vld [vmem:[#allocation3 + $0x30] sm:$0xff]
      %v627 = vld [vmem:[#allocation3 + $0x38] sm:$0xff]
      %v628 = vmul.f32 %v541, %v620
      %v629 = vmul.f32 %v543, %v621
      %v630 = vmul.f32 %v545, %v622
      %v631 = vmul.f32 %v547, %v623
      %v632 = vmul.f32 %v549, %v624
      %v633 = vmul.f32 %v551, %v625
      %v634 = vmul.f32 %v553, %v626
      %v635 = vmul.f32 %v555, %v627
      %v636 = vsel %vm499, %v605, 0.0
      %637 = vadd.xlane.f32.xlu0 %v636
      %v638 = vpop.xlane.xlu0 %637
      %v639 = vsel %vm499, %v607, 0.0
      %640 = vadd.xlane.f32.xlu0 %v639
      %v641 = vpop.xlane.xlu0 %640
      %v642 = vsel %vm499, %v609, 0.0
      %643 = vadd.xlane.f32.xlu0 %v642
      %v644 = vpop.xlane.xlu0 %643
      %v645 = vsel %vm499, %v611, 0.0
      %646 = vadd.xlane.f32.xlu0 %v645
      %v647 = vpop.xlane.xlu0 %646
      %v648 = vsel %vm499, %v613, 0.0
      %649 = vadd.xlane.f32.xlu0 %v648
      %v650 = vpop.xlane.xlu0 %649
      %v651 = vsel %vm499, %v615, 0.0
      %652 = vadd.xlane.f32.xlu0 %v651
      %v653 = vpop.xlane.xlu0 %652
      %v654 = vsel %vm499, %v617, 0.0
      %655 = vadd.xlane.f32.xlu0 %v654
      %v656 = vpop.xlane.xlu0 %655
      %v657 = vsel %vm499, %v619, 0.0
      %658 = vadd.xlane.f32.xlu0 %v657
      %v659 = vpop.xlane.xlu0 %658
      %v660 = vadd.f32 %v628, %v638
      %v661 = vadd.f32 %v629, %v641
      %v662 = vadd.f32 %v630, %v644
      %v663 = vadd.f32 %v631, %v647
      %v664 = vadd.f32 %v632, %v650
      %v665 = vadd.f32 %v633, %v653
      %v666 = vadd.f32 %v634, %v656
      %v667 = vadd.f32 %v635, %v659
      %vm668 = vcmask 7168
      %669 = vst.msk [vmem:[#allocation3] sm:$0xff] %vm668, %v660
      %670 = vst.msk [vmem:[#allocation3 + $0x8] sm:$0xff] %vm668, %v661
      %671 = vst.msk [vmem:[#allocation3 + $0x10] sm:$0xff] %vm668, %v662
      %672 = vst.msk [vmem:[#allocation3 + $0x18] sm:$0xff] %vm668, %v663
      %673 = vst.msk [vmem:[#allocation3 + $0x20] sm:$0xff] %vm668, %v664
      %674 = vst.msk [vmem:[#allocation3 + $0x28] sm:$0xff] %vm668, %v665
      %675 = vst.msk [vmem:[#allocation3 + $0x30] sm:$0xff] %vm668, %v666
      %676 = vst.msk [vmem:[#allocation3 + $0x38] sm:$0xff] %vm668, %v667
      %v677 = vld [vmem:[#allocation4] sm:$0xff]
      %v678 = vld [vmem:[#allocation4 + $0x8] sm:$0xff]
      %v679 = vld [vmem:[#allocation4 + $0x10] sm:$0xff]
      %v680 = vld [vmem:[#allocation4 + $0x18] sm:$0xff]
      %v681 = vld [vmem:[#allocation4 + $0x20] sm:$0xff]
      %v682 = vld [vmem:[#allocation4 + $0x28] sm:$0xff]
      %v683 = vld [vmem:[#allocation4 + $0x30] sm:$0xff]
      %v684 = vld [vmem:[#allocation4 + $0x38] sm:$0xff]
      %686 = vset.pattern.permute.xlu0 0
      %687 = vperm.xlu0 %686, %v541
      %v688 = vpop.permute.xlu0 %687
      %691 = vset.pattern.permute.xlu0 0
      %692 = vperm.xlu0 %691, %v543
      %v693 = vpop.permute.xlu0 %692
      %696 = vset.pattern.permute.xlu0 0
      %697 = vperm.xlu0 %696, %v545
      %v698 = vpop.permute.xlu0 %697
      %701 = vset.pattern.permute.xlu0 0
      %702 = vperm.xlu0 %701, %v547
      %v703 = vpop.permute.xlu0 %702
      %706 = vset.pattern.permute.xlu0 0
      %707 = vperm.xlu0 %706, %v549
      %v708 = vpop.permute.xlu0 %707
      %711 = vset.pattern.permute.xlu0 0
      %712 = vperm.xlu0 %711, %v551
      %v713 = vpop.permute.xlu0 %712
      %716 = vset.pattern.permute.xlu0 0
      %717 = vperm.xlu0 %716, %v553
      %v718 = vpop.permute.xlu0 %717
      %721 = vset.pattern.permute.xlu0 0
      %722 = vperm.xlu0 %721, %v555
      %v723 = vpop.permute.xlu0 %722
      %v725 = vmul.f32 %v688, %v677
      %v726 = vmul.f32 %v693, %v678
      %v727 = vmul.f32 %v698, %v679
      %v728 = vmul.f32 %v703, %v680
      %v729 = vmul.f32 %v708, %v681
      %v730 = vmul.f32 %v713, %v682
      %v731 = vmul.f32 %v718, %v683
      %v732 = vmul.f32 %v723, %v684
      %v733 = vpack.c.bf16 %v607, %v605
      %v734 = vpack.c.bf16 %v611, %v609
      %v735 = vpack.c.bf16 %v615, %v613
      %v736 = vpack.c.bf16 %v619, %v617
      %v745 = vunpack.c.l.b16 %v415
      %v746 = vunpack.c.l.b16 %v416
      %v747 = vunpack.c.l.b16 %v417
      %v748 = vunpack.c.l.b16 %v418
      %v749 = vunpack.c.l.b16 %v419
      %v750 = vunpack.c.l.b16 %v420
      %v751 = vunpack.c.l.b16 %v421
      %v752 = vunpack.c.l.b16 %v422
      %v753 = vpack.c.b16 %v746, %v745
      %v754 = vpack.c.b16 %v748, %v747
      %v755 = vpack.c.b16 %v750, %v749
      %v756 = vpack.c.b16 %v752, %v751
      %v762 = vsel %vm499, %v733, 0
      %v765 = vsel %vm499, %v734, 0
      %v768 = vsel %vm499, %v735, 0
      %v771 = vsel %vm499, %v736, 0
      %773 = vmatpush.bf16.msra.mxu0 0
      %774 = vmatpush.bf16.msra.mxu0 0
      %775 = vmatpush.bf16.msra.mxu0 0
      %776 = vmatpush.bf16.msra.mxu0 0
      %777 = vmatpush.bf16.msra.mxu0 %v756
      %778 = vmatpush.bf16.msra.mxu0 %v755
      %779 = vmatpush.bf16.msra.mxu0 %v754
      %780 = vmatpush.bf16.msra.mxu0 %v753
      %781 = vmatmul.bf16.gmra.mxu0 %v762
      %v782 = vpop.f32.mrf.mxu0
      %v783 = vadd.f32 0.0, %v782
      %v784 = vpop.f32.mrf.mxu0
      %v785 = vadd.f32 0.0, %v784
      %786 = vmatmul.bf16.gmra.mxu0 %v765
      %v787 = vpop.f32.mrf.mxu0
      %v788 = vadd.f32 0.0, %v787
      %v789 = vpop.f32.mrf.mxu0
      %v790 = vadd.f32 0.0, %v789
      %791 = vmatmul.bf16.gmra.mxu0 %v768
      %v792 = vpop.f32.mrf.mxu0
      %v793 = vadd.f32 0.0, %v792
      %v794 = vpop.f32.mrf.mxu0
      %v795 = vadd.f32 0.0, %v794
      %796 = vmatmul.bf16.gmra.mxu0 %v771
      %v797 = vpop.f32.mrf.mxu0
      %v798 = vadd.f32 0.0, %v797
      %v799 = vpop.f32.mrf.mxu0
      %v800 = vadd.f32 0.0, %v799
      %801 = vdwg.mxu0
      %v802 = vadd.f32 %v725, %v783
      %v803 = vadd.f32 %v726, %v785
      %v804 = vadd.f32 %v727, %v788
      %v805 = vadd.f32 %v728, %v790
      %v806 = vadd.f32 %v729, %v793
      %v807 = vadd.f32 %v730, %v795
      %v808 = vadd.f32 %v731, %v798
      %v809 = vadd.f32 %v732, %v800
      %810 = vst [vmem:[#allocation4] sm:$0xff] %v802
      %811 = vst [vmem:[#allocation4 + $0x8] sm:$0xff] %v803
      %812 = vst [vmem:[#allocation4 + $0x10] sm:$0xff] %v804
      %813 = vst [vmem:[#allocation4 + $0x18] sm:$0xff] %v805
      %814 = vst [vmem:[#allocation4 + $0x20] sm:$0xff] %v806
      %815 = vst [vmem:[#allocation4 + $0x28] sm:$0xff] %v807
      %816 = vst [vmem:[#allocation4 + $0x30] sm:$0xff] %v808
      %817 = vst [vmem:[#allocation4 + $0x38] sm:$0xff] %v809
      %818 = vst.msk [vmem:[#allocation2] sm:$0xff] %vm668, %v524
      %819 = vst.msk [vmem:[#allocation2 + $0x8] sm:$0xff] %vm668, %v525
      %820 = vst.msk [vmem:[#allocation2 + $0x10] sm:$0xff] %vm668, %v526
      %821 = vst.msk [vmem:[#allocation2 + $0x18] sm:$0xff] %vm668, %v527
      %822 = vst.msk [vmem:[#allocation2 + $0x20] sm:$0xff] %vm668, %v528
      %823 = vst.msk [vmem:[#allocation2 + $0x28] sm:$0xff] %vm668, %v529
      %824 = vst.msk [vmem:[#allocation2 + $0x30] sm:$0xff] %vm668, %v530
      %825 = vst.msk [vmem:[#allocation2 + $0x38] sm:$0xff] %vm668, %v531
      // Predicated region
      $region45: #{pam_forward.3} parent=39 // pred_check
        %p826 = pneg %p376
      $region46: #{pam_forward.3} parent=39 // pred_check_branch
        %828 = sbr.rel (%p826) target = $region48
      $region47: #{pam_forward.3} parent=39 // pred_region
        %s829 = sld [smem:[#allocation5]]
        %v830 = vld [vmem:[#allocation4] sm:$0xff]
        %v831 = vld [vmem:[#allocation4 + $0x8] sm:$0xff]
        %v832 = vld [vmem:[#allocation4 + $0x10] sm:$0xff]
        %v833 = vld [vmem:[#allocation4 + $0x18] sm:$0xff]
        %v834 = vld [vmem:[#allocation4 + $0x20] sm:$0xff]
        %v835 = vld [vmem:[#allocation4 + $0x28] sm:$0xff]
        %v836 = vld [vmem:[#allocation4 + $0x30] sm:$0xff]
        %v837 = vld [vmem:[#allocation4 + $0x38] sm:$0xff]
        %v838 = vld [vmem:[#allocation3] sm:$0xff]
        %v839 = vld [vmem:[#allocation3 + $0x8] sm:$0xff]
        %v840 = vld [vmem:[#allocation3 + $0x10] sm:$0xff]
        %v841 = vld [vmem:[#allocation3 + $0x18] sm:$0xff]
        %v842 = vld [vmem:[#allocation3 + $0x20] sm:$0xff]
        %v843 = vld [vmem:[#allocation3 + $0x28] sm:$0xff]
        %v844 = vld [vmem:[#allocation3 + $0x30] sm:$0xff]
        %v845 = vld [vmem:[#allocation3 + $0x38] sm:$0xff]
        %847 = vset.pattern.permute.xlu0 0
        %848 = vperm.xlu0 %847, %v838
        %v849 = vpop.permute.xlu0 %848
        %852 = vset.pattern.permute.xlu0 0
        %853 = vperm.xlu0 %852, %v839
        %v854 = vpop.permute.xlu0 %853
        %857 = vset.pattern.permute.xlu0 0
        %858 = vperm.xlu0 %857, %v840
        %v859 = vpop.permute.xlu0 %858
        %862 = vset.pattern.permute.xlu0 0
        %863 = vperm.xlu0 %862, %v841
        %v864 = vpop.permute.xlu0 %863
        %867 = vset.pattern.permute.xlu0 0
        %868 = vperm.xlu0 %867, %v842
        %v869 = vpop.permute.xlu0 %868
        %872 = vset.pattern.permute.xlu0 0
        %873 = vperm.xlu0 %872, %v843
        %v874 = vpop.permute.xlu0 %873
        %877 = vset.pattern.permute.xlu0 0
        %878 = vperm.xlu0 %877, %v844
        %v879 = vpop.permute.xlu0 %878
        %882 = vset.pattern.permute.xlu0 0
        %883 = vperm.xlu0 %882, %v845
        %v884 = vpop.permute.xlu0 %883
        %v886 = vrcp.pop %v849
        %v887 = vmul.f32 %v849, %v886
        %v888 = vsub.f32 1.0, %v887
        %v889 = vmul.f32 %v886, %v888
        %v890 = vadd.f32 %v886, %v889
        %vm891 = vweird.f32 %v849
        %vm892 = vweird.f32 %v886
        %vm893 = vmor %vm891, %vm892
        %v894 = vsel %vm893, %v886, %v890
        %v895 = vand.u32 2147483647, %v849
        %vm896 = vcmp.eq.f32.partialorder %v895, 8.507059e+37
        %v897 = vand.u32 %v849, 2147483648
        %v898 = vor.u32 1.1754944e-38, %v897
        %v899 = vsel %vm896, %v898, %v894
        %v900 = vmul.f32 %v830, %v899
        %v901 = vrcp.pop %v854
        %v902 = vmul.f32 %v854, %v901
        %v903 = vsub.f32 1.0, %v902
        %v904 = vmul.f32 %v901, %v903
        %v905 = vadd.f32 %v901, %v904
        %vm906 = vweird.f32 %v854
        %vm907 = vweird.f32 %v901
        %vm908 = vmor %vm906, %vm907
        %v909 = vsel %vm908, %v901, %v905
        %v910 = vand.u32 2147483647, %v854
        %vm911 = vcmp.eq.f32.partialorder %v910, 8.507059e+37
        %v912 = vand.u32 %v854, 2147483648
        %v913 = vor.u32 1.1754944e-38, %v912
        %v914 = vsel %vm911, %v913, %v909
        %v915 = vmul.f32 %v831, %v914
        %v916 = vrcp.pop %v859
        %v917 = vmul.f32 %v859, %v916
        %v918 = vsub.f32 1.0, %v917
        %v919 = vmul.f32 %v916, %v918
        %v920 = vadd.f32 %v916, %v919
        %vm921 = vweird.f32 %v859
        %vm922 = vweird.f32 %v916
        %vm923 = vmor %vm921, %vm922
        %v924 = vsel %vm923, %v916, %v920
        %v925 = vand.u32 2147483647, %v859
        %vm926 = vcmp.eq.f32.partialorder %v925, 8.507059e+37
        %v927 = vand.u32 %v859, 2147483648
        %v928 = vor.u32 1.1754944e-38, %v927
        %v929 = vsel %vm926, %v928, %v924
        %v930 = vmul.f32 %v832, %v929
        %v931 = vrcp.pop %v864
        %v932 = vmul.f32 %v864, %v931
        %v933 = vsub.f32 1.0, %v932
        %v934 = vmul.f32 %v931, %v933
        %v935 = vadd.f32 %v931, %v934
        %vm936 = vweird.f32 %v864
        %vm937 = vweird.f32 %v931
        %vm938 = vmor %vm936, %vm937
        %v939 = vsel %vm938, %v931, %v935
        %v940 = vand.u32 2147483647, %v864
        %vm941 = vcmp.eq.f32.partialorder %v940, 8.507059e+37
        %v942 = vand.u32 %v864, 2147483648
        %v943 = vor.u32 1.1754944e-38, %v942
        %v944 = vsel %vm941, %v943, %v939
        %v945 = vmul.f32 %v833, %v944
        %v946 = vrcp.pop %v869
        %v947 = vmul.f32 %v869, %v946
        %v948 = vsub.f32 1.0, %v947
        %v949 = vmul.f32 %v946, %v948
        %v950 = vadd.f32 %v946, %v949
        %vm951 = vweird.f32 %v869
        %vm952 = vweird.f32 %v946
        %vm953 = vmor %vm951, %vm952
        %v954 = vsel %vm953, %v946, %v950
        %v955 = vand.u32 2147483647, %v869
        %vm956 = vcmp.eq.f32.partialorder %v955, 8.507059e+37
        %v957 = vand.u32 %v869, 2147483648
        %v958 = vor.u32 1.1754944e-38, %v957
        %v959 = vsel %vm956, %v958, %v954
        %v960 = vmul.f32 %v834, %v959
        %v961 = vrcp.pop %v874
        %v962 = vmul.f32 %v874, %v961
        %v963 = vsub.f32 1.0, %v962
        %v964 = vmul.f32 %v961, %v963
        %v965 = vadd.f32 %v961, %v964
        %vm966 = vweird.f32 %v874
        %vm967 = vweird.f32 %v961
        %vm968 = vmor %vm966, %vm967
        %v969 = vsel %vm968, %v961, %v965
        %v970 = vand.u32 2147483647, %v874
        %vm971 = vcmp.eq.f32.partialorder %v970, 8.507059e+37
        %v972 = vand.u32 %v874, 2147483648
        %v973 = vor.u32 1.1754944e-38, %v972
        %v974 = vsel %vm971, %v973, %v969
        %v975 = vmul.f32 %v835, %v974
        %v976 = vrcp.pop %v879
        %v977 = vmul.f32 %v879, %v976
        %v978 = vsub.f32 1.0, %v977
        %v979 = vmul.f32 %v976, %v978
        %v980 = vadd.f32 %v976, %v979
        %vm981 = vweird.f32 %v879
        %vm982 = vweird.f32 %v976
        %vm983 = vmor %vm981, %vm982
        %v984 = vsel %vm983, %v976, %v980
        %v985 = vand.u32 2147483647, %v879
        %vm986 = vcmp.eq.f32.partialorder %v985, 8.507059e+37
        %v987 = vand.u32 %v879, 2147483648
        %v988 = vor.u32 1.1754944e-38, %v987
        %v989 = vsel %vm986, %v988, %v984
        %v990 = vmul.f32 %v836, %v989
        %v991 = vrcp.pop %v884
        %v992 = vmul.f32 %v884, %v991
        %v993 = vsub.f32 1.0, %v992
        %v994 = vmul.f32 %v991, %v993
        %v995 = vadd.f32 %v991, %v994
        %vm996 = vweird.f32 %v884
        %vm997 = vweird.f32 %v991
        %vm998 = vmor %vm996, %vm997
        %v999 = vsel %vm998, %v991, %v995
        %v1000 = vand.u32 2147483647, %v884
        %vm1001 = vcmp.eq.f32.partialorder %v1000, 8.507059e+37
        %v1002 = vand.u32 %v884, 2147483648
        %v1003 = vor.u32 1.1754944e-38, %v1002
        %v1004 = vsel %vm1001, %v1003, %v999
        %v1005 = vmul.f32 %v837, %v1004
        %v1006 = vstv %s829
        %v1007 = vmul.f32 %v1006, %v900
        %v1008 = vmul.f32 %v1006, %v915
        %v1009 = vmul.f32 %v1006, %v930
        %v1010 = vmul.f32 %v1006, %v945
        %v1011 = vmul.f32 %v1006, %v960
        %v1012 = vmul.f32 %v1006, %v975
        %v1013 = vmul.f32 %v1006, %v990
        %v1014 = vmul.f32 %v1006, %v1005
        %v1015 = vld [vmem:[%s363] sm:$0xff]
        %v1016 = vld [vmem:[%s363 + $0x8] sm:$0xff]
        %v1017 = vld [vmem:[%s363 + $0x10] sm:$0xff]
        %v1018 = vld [vmem:[%s363 + $0x18] sm:$0xff]
        %v1019 = vld [vmem:[%s363 + $0x20] sm:$0xff]
        %v1020 = vld [vmem:[%s363 + $0x28] sm:$0xff]
        %v1021 = vld [vmem:[%s363 + $0x30] sm:$0xff]
        %v1022 = vld [vmem:[%s363 + $0x38] sm:$0xff]
        %v1023 = vadd.f32 %v1007, %v1015
        %v1024 = vadd.f32 %v1008, %v1016
        %v1025 = vadd.f32 %v1009, %v1017
        %v1026 = vadd.f32 %v1010, %v1018
        %v1027 = vadd.f32 %v1011, %v1019
        %v1028 = vadd.f32 %v1012, %v1020
        %v1029 = vadd.f32 %v1013, %v1021
        %v1030 = vadd.f32 %v1014, %v1022
        %1031 = vst [vmem:[%s373] sm:$0xff] %v1023
        %1032 = vst [vmem:[%s373 + $0x8] sm:$0xff] %v1024
        %1033 = vst [vmem:[%s373 + $0x10] sm:$0xff] %v1025
        %1034 = vst [vmem:[%s373 + $0x18] sm:$0xff] %v1026
        %1035 = vst [vmem:[%s373 + $0x20] sm:$0xff] %v1027
        %1036 = vst [vmem:[%s373 + $0x28] sm:$0xff] %v1028
        %1037 = vst [vmem:[%s373 + $0x30] sm:$0xff] %v1029
        %1038 = vst [vmem:[%s373 + $0x38] sm:$0xff] %v1030
      $region48: #{pam_forward.3} parent=39 // pred_fallthru
        _
      %s1039 = smul.u32 8, %s23
      %p1040 = scmp.lt.s32.totalorder %s22, 1
      %s1041 = scalar_select %p1040, %s22, 1
      %p1042 = scmp.lt.s32.totalorder %s1039, 7
      %s1043 = scalar_select %p1042, %s1039, 7
      %s1044 = smul.addr %s1041, 8
      %s1045 = sadd.s32 %s1043, %s1044
      %s1046 = smul.addr %s1045, 8
      %s1047 = scalar_lea.vmem %s5, %s1046
      // Predicated region
      $region49: #{pam_forward.3} parent=39 // pred_check
        %p1048 = pneg %p189
      $region50: #{pam_forward.3} parent=39 // pred_check_branch
        %1050 = sbr.rel (%p1048) target = $region52
      $region51: #{pam_forward.3} parent=39 // pred_region
        %s1051 = smul.u32 8, %s23
      $region52: #{pam_forward.3} parent=39 // pred_fallthru
        _
    $region40: #{pam_forward.3} parent=5 // pred_fallthru
      _
    %p1052 = scmp.le.s32.totalorder 2, %s12
    // Predicated region
    $region53: #{pam_forward.3} parent=5 // pred_check
      %p1053 = pneg %p1052
    $region54: #{pam_forward.3} parent=5 // pred_check_branch
      %1055 = sbr.rel (%p1053) target = $region56
    $region55: #{pam_forward.3} parent=5 // pred_region
      %s1056 = ssub.s32 %s12, 2
      // Predicated region
      $region57: #{pam_forward.3} parent=55 // pred_check
        %p1057 = pneg %p195
      $region58: #{pam_forward.3} parent=55 // pred_check_branch
        %1059 = sbr.rel (%p1057) target = $region60
      $region59: #{pam_forward.3} parent=55 // pred_region
        %s1060 = smul.u32 8, %s26
        %p1061 = scmp.lt.s32.totalorder %s25, 1
        %s1062 = scalar_select %p1061, %s25, 1
        %p1063 = scmp.lt.s32.totalorder %s1060, 7
        %s1064 = scalar_select %p1063, %s1060, 7
        %s1065 = smul.addr %s1062, 8
        %s1066 = sadd.s32 %s1064, %s1065
        %s1067 = smul.addr %s1066, 8
        %s1068 = scalar_lea.vmem %s5, %s1067
      $region60: #{pam_forward.3} parent=55 // pred_fallthru
        _
    $region56: #{pam_forward.3} parent=5 // pred_fallthru
      _
  $region6: #{pam_forward.3} parent=0 // loop_footer
    %s16 = sadd.s32 1, %s12
  $region7: #{pam_forward.3} parent=0 // loop_footer_branch
    %11 = sbr.rel target = $region3
  $region8: #{pam_forward.3} parent=0 // loop_exit
    _

// kernel: pam_forward.2
$region0: #{pam_forward.2}
  #allocation0 [shape = 'u32[]', space=smem, size = 0x4, offset = 0x4, fixed_abs, tag = 'smem constant byte address 0x4 - core index']
  #allocation1 [shape = 'u32[72,128]{1,0:T(1,128)}', space=vmem, size = 0x9000, scoped, tag = 'internal scratch']
  %s0 = inlined_call_operand.vmem [shape: f32[2,64,128], index: 0, kind: input, shape index: {}]
  %s1 = inlined_call_operand.vmem [shape: bf16[128,16], index: 1, kind: input, shape index: {}]
  %s2 = inlined_call_operand.vmem [shape: f32[1,16], index: 2, kind: input, shape index: {}]
  %s3 = inlined_call_operand.vmem [shape: bf16[128,16], index: 3, kind: input, shape index: {}]
  %s4 = inlined_call_operand.vmem [shape: f32[1,16], index: 4, kind: input, shape index: {}]
  %s5 = inlined_call_operand.vmem [shape: bf16[128,128], index: 5, kind: input, shape index: {}]
  %s6 = inlined_call_operand.vmem [shape: f32[1,128], index: 6, kind: input, shape index: {}]
  %s7 = inlined_call_operand.vmem [shape: bf16[2,64,16], index: 7, kind: output, shape index: {0}]
  %s8 = inlined_call_operand.vmem [shape: bf16[2,64,16], index: 8, kind: output, shape index: {1}]
  %s9 = inlined_call_operand.vmem [shape: bf16[2,64,128], index: 9, kind: output, shape index: {2}]
  %10 = xla_tuple %s7, %s8, %s9
  %s11 = sld [smem:[#allocation0]]
  $region77: #{pam_forward.2} parent=0
    _
  %s13 = ssub.s32 1, %s11
  %s14 = scalar_select 0, %s13, %s11
  loop: start=0, step=1, limit=4
  $region2: #{pam_forward.2} parent=0 // loop_pre_header
    _
  $region3: #{pam_forward.2} parent=0 // loop_header
    %s16 = sphi 0, %s20
    %p17 = scmp.ge.s32.totalorder %s16, 4
    %s23 = sphi 0, %s35
    %s24 = sphi 0, %s31
    %s25 = sphi 0, %s23
    %s26 = sphi 0, %s24
    %s27 = sphi 0, %s25
    %s28 = sphi 0, %s26
    %s40 = sphi 0, %s42
    %s43 = sphi 0, %s40
    %s44 = sphi 0, %s43
    %s60 = sphi 0, %s44
    %s64 = sphi 0, %s64
    %s66 = sphi 0, %s64
    %s67 = sphi 0, %s66
    %s81 = sphi 0, %s67
    %s85 = sphi 0, %s85
    %s87 = sphi 0, %s85
    %s88 = sphi 0, %s87
    %s102 = sphi 0, %s88
    %s106 = sphi 0, %s106
    %s108 = sphi 0, %s106
    %s109 = sphi 0, %s108
    %s123 = sphi 0, %s109
    %s127 = sphi 0, %s127
    %s129 = sphi 0, %s127
    %s130 = sphi 0, %s129
    %s144 = sphi 0, %s130
    %s148 = sphi 0, %s148
    %s150 = sphi 0, %s148
    %s151 = sphi 0, %s150
    %s165 = sphi 0, %s151
    %s169 = sphi 0, %s169
    %s171 = sphi 0, %s169
    %s172 = sphi 0, %s171
    %s186 = sphi 0, %s172
    %s194 = sphi 0, %s196
    %s197 = sphi 0, %s194
    %s198 = sphi 0, %s197
    %s214 = sphi 0, %s198
    %s222 = sphi 0, %s224
    %s225 = sphi 0, %s222
    %s226 = sphi 0, %s225
    %s242 = sphi 0, %s226
    %s250 = sphi 0, %s252
    %s253 = sphi 0, %s250
    %s254 = sphi 0, %s253
    %s270 = sphi 0, %s254
  $region4: #{pam_forward.2} parent=0 // loop_header_branch
    %19 = sbr.rel (%p17) target = $region8
  $region5: #{pam_forward.2} parent=0 // loop_body
    %s21 = ssub.s32 %s16, 1
    %s22 = ssub.s32 %s16, 2
    %s29 = sadd.s32 1, %s24
    %p30 = scmp.ge.s32.totalorder %s29, 1
    %s31 = scalar_select %p30, 0, %s29
    %s32 = sadd.s32 1, %s23
    %s33 = scalar_select %p30, %s32, %s23
    %p34 = scmp.ge.s32.totalorder %s33, 2
    %s35 = scalar_select %p34, 0, %s33
    %s36 = ssub.s32 %s23, %s35
    %s37 = ssub.s32 %s24, %s31
    %s38 = sor.u32 %s36, %s37
    %p39 = scmp.eq.s32.totalorder %s38, 0
    %s41 = sadd.s32 %s40, 1
    %s42 = scalar_select %p39, %s40, %s41
    %p45 = pneg %p39
    %p46 = scmp.eq.s32.totalorder %s16, 1
    %p47 = por %p45, %p46
    %p48 = scmp.ne.s32.totalorder %s40, %s43
    %p49 = scmp.eq.s32.totalorder %s16, 0
    %p50 = por %p48, %p49
    %p51 = scmp.ne.s32.totalorder %s40, %s43
    %p52 = scmp.eq.s32.totalorder %s21, 1
    %p53 = por %p51, %p52
    %p54 = scmp.ne.s32.totalorder %s43, %s44
    %p55 = scmp.eq.s32.totalorder %s21, 0
    %p56 = por %p54, %p55
    %p57 = scmp.ne.s32.totalorder %s43, %s44
    %p58 = scmp.eq.s32.totalorder %s22, 1
    %p59 = por %p57, %p58
    %p61 = scmp.ne.s32.totalorder %s44, %s60
    %p62 = scmp.eq.s32.totalorder %s22, 0
    %p63 = por %p61, %p62
    %s65 = sadd.s32 %s64, 1
    %p68 = scmp.eq.s32.totalorder %s16, 1
    %p69 = scmp.ne.s32.totalorder %s64, %s66
    %p70 = scmp.eq.s32.totalorder %s16, 0
    %p71 = por %p69, %p70
    %p72 = scmp.ne.s32.totalorder %s64, %s66
    %p73 = scmp.eq.s32.totalorder %s21, 1
    %p74 = por %p72, %p73
    %p75 = scmp.ne.s32.totalorder %s66, %s67
    %p76 = scmp.eq.s32.totalorder %s21, 0
    %p77 = por %p75, %p76
    %p78 = scmp.ne.s32.totalorder %s66, %s67
    %p79 = scmp.eq.s32.totalorder %s22, 1
    %p80 = por %p78, %p79
    %p82 = scmp.ne.s32.totalorder %s67, %s81
    %p83 = scmp.eq.s32.totalorder %s22, 0
    %p84 = por %p82, %p83
    %s86 = sadd.s32 %s85, 1
    %p89 = scmp.eq.s32.totalorder %s16, 1
    %p90 = scmp.ne.s32.totalorder %s85, %s87
    %p91 = scmp.eq.s32.totalorder %s16, 0
    %p92 = por %p90, %p91
    %p93 = scmp.ne.s32.totalorder %s85, %s87
    %p94 = scmp.eq.s32.totalorder %s21, 1
    %p95 = por %p93, %p94
    %p96 = scmp.ne.s32.totalorder %s87, %s88
    %p97 = scmp.eq.s32.totalorder %s21, 0
    %p98 = por %p96, %p97
    %p99 = scmp.ne.s32.totalorder %s87, %s88
    %p100 = scmp.eq.s32.totalorder %s22, 1
    %p101 = por %p99, %p100
    %p103 = scmp.ne.s32.totalorder %s88, %s102
    %p104 = scmp.eq.s32.totalorder %s22, 0
    %p105 = por %p103, %p104
    %s107 = sadd.s32 %s106, 1
    %p110 = scmp.eq.s32.totalorder %s16, 1
    %p111 = scmp.ne.s32.totalorder %s106, %s108
    %p112 = scmp.eq.s32.totalorder %s16, 0
    %p113 = por %p111, %p112
    %p114 = scmp.ne.s32.totalorder %s106, %s108
    %p115 = scmp.eq.s32.totalorder %s21, 1
    %p116 = por %p114, %p115
    %p117 = scmp.ne.s32.totalorder %s108, %s109
    %p118 = scmp.eq.s32.totalorder %s21, 0
    %p119 = por %p117, %p118
    %p120 = scmp.ne.s32.totalorder %s108, %s109
    %p121 = scmp.eq.s32.totalorder %s22, 1
    %p122 = por %p120, %p121
    %p124 = scmp.ne.s32.totalorder %s109, %s123
    %p125 = scmp.eq.s32.totalorder %s22, 0
    %p126 = por %p124, %p125
    %s128 = sadd.s32 %s127, 1
    %p131 = scmp.eq.s32.totalorder %s16, 1
    %p132 = scmp.ne.s32.totalorder %s127, %s129
    %p133 = scmp.eq.s32.totalorder %s16, 0
    %p134 = por %p132, %p133
    %p135 = scmp.ne.s32.totalorder %s127, %s129
    %p136 = scmp.eq.s32.totalorder %s21, 1
    %p137 = por %p135, %p136
    %p138 = scmp.ne.s32.totalorder %s129, %s130
    %p139 = scmp.eq.s32.totalorder %s21, 0
    %p140 = por %p138, %p139
    %p141 = scmp.ne.s32.totalorder %s129, %s130
    %p142 = scmp.eq.s32.totalorder %s22, 1
    %p143 = por %p141, %p142
    %p145 = scmp.ne.s32.totalorder %s130, %s144
    %p146 = scmp.eq.s32.totalorder %s22, 0
    %p147 = por %p145, %p146
    %s149 = sadd.s32 %s148, 1
    %p152 = scmp.eq.s32.totalorder %s16, 1
    %p153 = scmp.ne.s32.totalorder %s148, %s150
    %p154 = scmp.eq.s32.totalorder %s16, 0
    %p155 = por %p153, %p154
    %p156 = scmp.ne.s32.totalorder %s148, %s150
    %p157 = scmp.eq.s32.totalorder %s21, 1
    %p158 = por %p156, %p157
    %p159 = scmp.ne.s32.totalorder %s150, %s151
    %p160 = scmp.eq.s32.totalorder %s21, 0
    %p161 = por %p159, %p160
    %p162 = scmp.ne.s32.totalorder %s150, %s151
    %p163 = scmp.eq.s32.totalorder %s22, 1
    %p164 = por %p162, %p163
    %p166 = scmp.ne.s32.totalorder %s151, %s165
    %p167 = scmp.eq.s32.totalorder %s22, 0
    %p168 = por %p166, %p167
    %s170 = sadd.s32 %s169, 1
    %p173 = scmp.eq.s32.totalorder %s16, 1
    %p174 = scmp.ne.s32.totalorder %s169, %s171
    %p175 = scmp.eq.s32.totalorder %s16, 0
    %p176 = por %p174, %p175
    %p177 = scmp.ne.s32.totalorder %s169, %s171
    %p178 = scmp.eq.s32.totalorder %s21, 1
    %p179 = por %p177, %p178
    %p180 = scmp.ne.s32.totalorder %s171, %s172
    %p181 = scmp.eq.s32.totalorder %s21, 0
    %p182 = por %p180, %p181
    %p183 = scmp.ne.s32.totalorder %s171, %s172
    %p184 = scmp.eq.s32.totalorder %s22, 1
    %p185 = por %p183, %p184
    %p187 = scmp.ne.s32.totalorder %s172, %s186
    %p188 = scmp.eq.s32.totalorder %s22, 0
    %p189 = por %p187, %p188
    %s190 = ssub.s32 %s23, %s35
    %s191 = ssub.s32 %s24, %s31
    %s192 = sor.u32 %s190, %s191
    %p193 = scmp.eq.s32.totalorder %s192, 0
    %s195 = sadd.s32 %s194, 1
    %s196 = scalar_select %p193, %s194, %s195
    %p199 = pneg %p193
    %p200 = scmp.eq.s32.totalorder %s16, 1
    %p201 = por %p199, %p200
    %p202 = scmp.ne.s32.totalorder %s194, %s197
    %p203 = scmp.eq.s32.totalorder %s16, 0
    %p204 = por %p202, %p203
    %p205 = scmp.ne.s32.totalorder %s194, %s197
    %p206 = scmp.eq.s32.totalorder %s21, 1
    %p207 = por %p205, %p206
    %p208 = scmp.ne.s32.totalorder %s197, %s198
    %p209 = scmp.eq.s32.totalorder %s21, 0
    %p210 = por %p208, %p209
    %p211 = scmp.ne.s32.totalorder %s197, %s198
    %p212 = scmp.eq.s32.totalorder %s22, 1
    %p213 = por %p211, %p212
    %p215 = scmp.ne.s32.totalorder %s198, %s214
    %p216 = scmp.eq.s32.totalorder %s22, 0
    %p217 = por %p215, %p216
    %s218 = ssub.s32 %s23, %s35
    %s219 = ssub.s32 %s24, %s31
    %s220 = sor.u32 %s218, %s219
    %p221 = scmp.eq.s32.totalorder %s220, 0
    %s223 = sadd.s32 %s222, 1
    %s224 = scalar_select %p221, %s222, %s223
    %p227 = pneg %p221
    %p228 = scmp.eq.s32.totalorder %s16, 1
    %p229 = por %p227, %p228
    %p230 = scmp.ne.s32.totalorder %s222, %s225
    %p231 = scmp.eq.s32.totalorder %s16, 0
    %p232 = por %p230, %p231
    %p233 = scmp.ne.s32.totalorder %s222, %s225
    %p234 = scmp.eq.s32.totalorder %s21, 1
    %p235 = por %p233, %p234
    %p236 = scmp.ne.s32.totalorder %s225, %s226
    %p237 = scmp.eq.s32.totalorder %s21, 0
    %p238 = por %p236, %p237
    %p239 = scmp.ne.s32.totalorder %s225, %s226
    %p240 = scmp.eq.s32.totalorder %s22, 1
    %p241 = por %p239, %p240
    %p243 = scmp.ne.s32.totalorder %s226, %s242
    %p244 = scmp.eq.s32.totalorder %s22, 0
    %p245 = por %p243, %p244
    %s246 = ssub.s32 %s23, %s35
    %s247 = ssub.s32 %s24, %s31
    %s248 = sor.u32 %s246, %s247
    %p249 = scmp.eq.s32.totalorder %s248, 0
    %s251 = sadd.s32 %s250, 1
    %s252 = scalar_select %p249, %s250, %s251
    %p255 = pneg %p249
    %p256 = scmp.eq.s32.totalorder %s16, 1
    %p257 = por %p255, %p256
    %p258 = scmp.ne.s32.totalorder %s250, %s253
    %p259 = scmp.eq.s32.totalorder %s16, 0
    %p260 = por %p258, %p259
    %p261 = scmp.ne.s32.totalorder %s250, %s253
    %p262 = scmp.eq.s32.totalorder %s21, 1
    %p263 = por %p261, %p262
    %p264 = scmp.ne.s32.totalorder %s253, %s254
    %p265 = scmp.eq.s32.totalorder %s21, 0
    %p266 = por %p264, %p265
    %p267 = scmp.ne.s32.totalorder %s253, %s254
    %p268 = scmp.eq.s32.totalorder %s22, 1
    %p269 = por %p267, %p268
    %p271 = scmp.ne.s32.totalorder %s254, %s270
    %p272 = scmp.eq.s32.totalorder %s22, 0
    %p273 = por %p271, %p272
    %p274 = scmp.le.s32.totalorder 1, %s16
    %p275 = scmp.lt.s32.totalorder %s16, 3
    %p276 = pnand %p274, %p275
    %p277 = pneg %p276
    // Predicated region
    $region9: #{pam_forward.2} parent=5 // pred_check
      _
    $region10: #{pam_forward.2} parent=5 // pred_check_branch
      %279 = sbr.rel (%p276) target = $region12
    $region11: #{pam_forward.2} parent=5 // pred_region
      %s280 = ssub.s32 %s16, 1
      // Predicated region
      $region13: #{pam_forward.2} parent=11 // pred_check
        %p281 = pneg %p77
      $region14: #{pam_forward.2} parent=11 // pred_check_branch
        %283 = sbr.rel (%p281) target = $region16
      $region15: #{pam_forward.2} parent=11 // pred_region
        _
      $region16: #{pam_forward.2} parent=11 // pred_fallthru
        _
      // Predicated region
      $region17: #{pam_forward.2} parent=11 // pred_check
        %p284 = pneg %p98
      $region18: #{pam_forward.2} parent=11 // pred_check_branch
        %286 = sbr.rel (%p284) target = $region20
      $region19: #{pam_forward.2} parent=11 // pred_region
        _
      $region20: #{pam_forward.2} parent=11 // pred_fallthru
        _
      // Predicated region
      $region21: #{pam_forward.2} parent=11 // pred_check
        %p287 = pneg %p119
      $region22: #{pam_forward.2} parent=11 // pred_check_branch
        %289 = sbr.rel (%p287) target = $region24
      $region23: #{pam_forward.2} parent=11 // pred_region
        _
      $region24: #{pam_forward.2} parent=11 // pred_fallthru
        _
      // Predicated region
      $region25: #{pam_forward.2} parent=11 // pred_check
        %p290 = pneg %p140
      $region26: #{pam_forward.2} parent=11 // pred_check_branch
        %292 = sbr.rel (%p290) target = $region28
      $region27: #{pam_forward.2} parent=11 // pred_region
        _
      $region28: #{pam_forward.2} parent=11 // pred_fallthru
        _
      // Predicated region
      $region29: #{pam_forward.2} parent=11 // pred_check
        %p293 = pneg %p161
      $region30: #{pam_forward.2} parent=11 // pred_check_branch
        %295 = sbr.rel (%p293) target = $region32
      $region31: #{pam_forward.2} parent=11 // pred_region
        _
      $region32: #{pam_forward.2} parent=11 // pred_fallthru
        _
      // Predicated region
      $region33: #{pam_forward.2} parent=11 // pred_check
        %p296 = pneg %p182
      $region34: #{pam_forward.2} parent=11 // pred_check_branch
        %298 = sbr.rel (%p296) target = $region36
      $region35: #{pam_forward.2} parent=11 // pred_region
        _
      $region36: #{pam_forward.2} parent=11 // pred_fallthru
        _
    $region12: #{pam_forward.2} parent=5 // pred_fallthru
      _
    %p299 = scmp.lt.s32.totalorder %s16, 2
    // Predicated region
    $region37: #{pam_forward.2} parent=5 // pred_check
      %p300 = pneg %p299
    $region38: #{pam_forward.2} parent=5 // pred_check_branch
      %302 = sbr.rel (%p300) target = $region40
    $region39: #{pam_forward.2} parent=5 // pred_region
      // Predicated region
      $region41: #{pam_forward.2} parent=39 // pred_check
        %p303 = pneg %p50
      $region42: #{pam_forward.2} parent=39 // pred_check_branch
        %305 = sbr.rel (%p303) target = $region44
      $region43: #{pam_forward.2} parent=39 // pred_region
        %s306 = smul.u32 8, %s24
        %p307 = scmp.lt.s32.totalorder %s23, 1
        %s308 = scalar_select %p307, %s23, 1
        %p309 = scmp.lt.s32.totalorder %s306, 7
        %s310 = scalar_select %p309, %s306, 7
        %s311 = smul.addr %s308, 8
        %s312 = sadd.s32 %s310, %s311
        %s313 = smul.addr %s312, 8
        %s314 = scalar_lea.vmem %s0, %s313
        %s315 = smul.u32 8, %s24
      $region44: #{pam_forward.2} parent=39 // pred_fallthru
        _
    $region40: #{pam_forward.2} parent=5 // pred_fallthru
      _
    %p316 = scmp.le.s32.totalorder 1, %s16
    %p317 = scmp.lt.s32.totalorder %s16, 3
    %p318 = pnand %p316, %p317
    %p319 = pneg %p318
    // Predicated region
    $region45: #{pam_forward.2} parent=5 // pred_check
      _
    $region46: #{pam_forward.2} parent=5 // pred_check_branch
      %321 = sbr.rel (%p318) target = $region48
    $region47: #{pam_forward.2} parent=5 // pred_region
      %s322 = ssub.s32 %s16, 1
      %s323 = smul.u32 8, %s26
      %p324 = scmp.lt.s32.totalorder %s25, 1
      %s325 = scalar_select %p324, %s25, 1
      %p326 = scmp.lt.s32.totalorder %s323, 7
      %s327 = scalar_select %p326, %s323, 7
      %s328 = smul.addr %s325, 8
      %s329 = sadd.s32 %s327, %s328
      %s330 = smul.addr %s329, 8
      %s331 = scalar_lea.vmem %s0, %s330
      %p332 = pneg %p56
      %p333 = pneg %p53
      %p334 = pneg %p77
      %p335 = pneg %p74
      %p336 = pneg %p98
      %p337 = pneg %p95
      %p338 = pneg %p119
      %p339 = pneg %p116
      %p340 = pneg %p140
      %p341 = pneg %p137
      %p342 = pneg %p161
      %p343 = pneg %p158
      %p344 = pneg %p182
      %p345 = pneg %p179
      %p346 = pneg %p210
      %p347 = pneg %p207
      %s348 = smul.u32 8, %s26
      %p349 = scmp.lt.s32.totalorder %s25, 1
      %s350 = scalar_select %p349, %s25, 1
      %p351 = scmp.lt.s32.totalorder %s348, 7
      %s352 = scalar_select %p351, %s348, 7
      %s353 = smul.addr %s350, 8
      %s354 = sadd.s32 %s352, %s353
      %s355 = smul.addr %s354, 4
      %s356 = scalar_lea.vmem %s7, %s355
      %p357 = pneg %p238
      %p358 = pneg %p235
      %s359 = smul.u32 8, %s26
      %p360 = scmp.lt.s32.totalorder %s25, 1
      %s361 = scalar_select %p360, %s25, 1
      %p362 = scmp.lt.s32.totalorder %s359, 7
      %s363 = scalar_select %p362, %s359, 7
      %s364 = smul.addr %s361, 8
      %s365 = sadd.s32 %s363, %s364
      %s366 = smul.addr %s365, 4
      %s367 = scalar_lea.vmem %s8, %s366
      %p368 = pneg %p266
      %p369 = pneg %p263
      %s370 = smul.u32 8, %s26
      %p371 = scmp.lt.s32.totalorder %s25, 1
      %s372 = scalar_select %p371, %s25, 1
      %p373 = scmp.lt.s32.totalorder %s370, 7
      %s374 = scalar_select %p373, %s370, 7
      %s375 = smul.addr %s372, 8
      %s376 = sadd.s32 %s374, %s375
      %s377 = smul.addr %s376, 4
      %s378 = scalar_lea.vmem %s9, %s377
      %s379 = smul.u32 8, %s26
      %p380 = scmp.lt.s32.totalorder %s25, 1
      %s381 = scalar_select %p380, %s25, 1
      %p382 = scmp.lt.s32.totalorder %s379, 7
      %s383 = scalar_select %p382, %s379, 7
      %s384 = smul.addr %s381, 8
      %s385 = sadd.s32 %s383, %s384
      %s386 = smul.addr %s385, 8
      %s387 = scalar_lea.vmem %s0, %s386
      %s388 = smul.u32 8, %s26
      %s389 = smul.u32 8, %s26
      %p390 = scmp.lt.s32.totalorder %s25, 1
      %s391 = scalar_select %p390, %s25, 1
      %p392 = scmp.lt.s32.totalorder %s389, 7
      %s393 = scalar_select %p392, %s389, 7
      %s394 = smul.addr %s391, 8
      %s395 = sadd.s32 %s393, %s394
      %s396 = smul.addr %s395, 4
      %s397 = scalar_lea.vmem %s7, %s396
      %s398 = smul.u32 8, %s26
      %s399 = smul.u32 8, %s26
      %p400 = scmp.lt.s32.totalorder %s25, 1
      %s401 = scalar_select %p400, %s25, 1
      %p402 = scmp.lt.s32.totalorder %s399, 7
      %s403 = scalar_select %p402, %s399, 7
      %s404 = smul.addr %s401, 8
      %s405 = sadd.s32 %s403, %s404
      %s406 = smul.addr %s405, 4
      %s407 = scalar_lea.vmem %s8, %s406
      %s408 = smul.u32 8, %s26
      %s409 = smul.u32 8, %s26
      %p410 = scmp.lt.s32.totalorder %s25, 1
      %s411 = scalar_select %p410, %s25, 1
      %p412 = scmp.lt.s32.totalorder %s409, 7
      %s413 = scalar_select %p412, %s409, 7
      %s414 = smul.addr %s411, 8
      %s415 = sadd.s32 %s413, %s414
      %s416 = smul.addr %s415, 4
      %s417 = scalar_lea.vmem %s9, %s416
      %s418 = smul.u32 8, %s26
      %v419 = vld [vmem:[%s387] sm:$0xff]
      %v420 = vld [vmem:[%s387 + $0x8] sm:$0xff]
      %v421 = vld [vmem:[%s387 + $0x10] sm:$0xff]
      %v422 = vld [vmem:[%s387 + $0x18] sm:$0xff]
      %v423 = vld [vmem:[%s387 + $0x20] sm:$0xff]
      %v424 = vld [vmem:[%s387 + $0x28] sm:$0xff]
      %v425 = vld [vmem:[%s387 + $0x30] sm:$0xff]
      %v426 = vld [vmem:[%s387 + $0x38] sm:$0xff]
      %v427 = vpack.c.bf16 %v420, %v419
      %v428 = vpack.c.bf16 %v422, %v421
      %v429 = vpack.c.bf16 %v424, %v423
      %v430 = vpack.c.bf16 %v426, %v425
      %v431 = vld [vmem:[%s1] sm:$0xf]
      %v432 = vld [vmem:[%s1 + $0x4] sm:$0xf]
      %v433 = vld [vmem:[%s1 + $0x8] sm:$0xf]
      %v434 = vld [vmem:[%s1 + $0xc] sm:$0xf]
      %v435 = vld [vmem:[%s1 + $0x10] sm:$0xf]
      %v436 = vld [vmem:[%s1 + $0x14] sm:$0xf]
      %v437 = vld [vmem:[%s1 + $0x18] sm:$0xf]
      %v438 = vld [vmem:[%s1 + $0x1c] sm:$0xf]
      %v439 = vld [vmem:[%s1 + $0x20] sm:$0xf]
      %v440 = vld [vmem:[%s1 + $0x24] sm:$0xf]
      %v441 = vld [vmem:[%s1 + $0x28] sm:$0xf]
      %v442 = vld [vmem:[%s1 + $0x2c] sm:$0xf]
      %v443 = vld [vmem:[%s1 + $0x30] sm:$0xf]
      %v444 = vld [vmem:[%s1 + $0x34] sm:$0xf]
      %v445 = vld [vmem:[%s1 + $0x38] sm:$0xf]
      %v446 = vld [vmem:[%s1 + $0x3c] sm:$0xf]
      %v447 = vld [vmem:[%s2] sm:$0x1]
      %v449 = vperm.slane %v447, 0
      %v467 = vunpack.c.l.b16 %v431
      %v468 = vunpack.c.l.b16 %v432
      %v469 = vunpack.c.l.b16 %v433
      %v470 = vunpack.c.l.b16 %v434
      %v471 = vunpack.c.l.b16 %v435
      %v472 = vunpack.c.l.b16 %v436
      %v473 = vunpack.c.l.b16 %v437
      %v474 = vunpack.c.l.b16 %v438
      %v475 = vunpack.c.l.b16 %v439
      %v476 = vunpack.c.l.b16 %v440
      %v477 = vunpack.c.l.b16 %v441
      %v478 = vunpack.c.l.b16 %v442
      %v479 = vunpack.c.l.b16 %v443
      %v480 = vunpack.c.l.b16 %v444
      %v481 = vunpack.c.l.b16 %v445
      %v482 = vunpack.c.l.b16 %v446
      %v483 = vpack.c.b16 %v468, %v467
      %v484 = vpack.c.b16 %v470, %v469
      %v485 = vpack.c.b16 %v472, %v471
      %v486 = vpack.c.b16 %v474, %v473
      %v487 = vpack.c.b16 %v476, %v475
      %v488 = vpack.c.b16 %v478, %v477
      %v489 = vpack.c.b16 %v480, %v479
      %v490 = vpack.c.b16 %v482, %v481
      %499 = vmatpush.bf16.msra.mxu0 %v490
      %500 = vmatpush.bf16.msra.mxu0 %v489
      %501 = vmatpush.bf16.msra.mxu0 %v488
      %502 = vmatpush.bf16.msra.mxu0 %v487
      %503 = vmatpush.bf16.msra.mxu0 %v486
      %504 = vmatpush.bf16.msra.mxu0 %v485
      %505 = vmatpush.bf16.msra.mxu0 %v484
      %506 = vmatpush.bf16.msra.mxu0 %v483
      %507 = vmatmul.bf16.gmra.mxu0 %v427
      %v508 = vpop.f32.mrf.mxu0
      %v509 = vadd.f32 %v449, %v508
      %v510 = vpop.f32.mrf.mxu0
      %v511 = vadd.f32 %v449, %v510
      %512 = vmatmul.bf16.gmra.mxu0 %v428
      %v513 = vpop.f32.mrf.mxu0
      %v514 = vadd.f32 %v449, %v513
      %v515 = vpop.f32.mrf.mxu0
      %v516 = vadd.f32 %v449, %v515
      %517 = vmatmul.bf16.gmra.mxu0 %v429
      %v518 = vpop.f32.mrf.mxu0
      %v519 = vadd.f32 %v449, %v518
      %v520 = vpop.f32.mrf.mxu0
      %v521 = vadd.f32 %v449, %v520
      %522 = vmatmul.bf16.gmra.mxu0 %v430
      %v523 = vpop.f32.mrf.mxu0
      %v524 = vadd.f32 %v449, %v523
      %v525 = vpop.f32.mrf.mxu0
      %v526 = vadd.f32 %v449, %v525
      %527 = vdwg.mxu0
      %v528 = vld [vmem:[%s3] sm:$0xf]
      %v529 = vld [vmem:[%s3 + $0x4] sm:$0xf]
      %v530 = vld [vmem:[%s3 + $0x8] sm:$0xf]
      %v531 = vld [vmem:[%s3 + $0xc] sm:$0xf]
      %v532 = vld [vmem:[%s3 + $0x10] sm:$0xf]
      %v533 = vld [vmem:[%s3 + $0x14] sm:$0xf]
      %v534 = vld [vmem:[%s3 + $0x18] sm:$0xf]
      %v535 = vld [vmem:[%s3 + $0x1c] sm:$0xf]
      %v536 = vld [vmem:[%s3 + $0x20] sm:$0xf]
      %v537 = vld [vmem:[%s3 + $0x24] sm:$0xf]
      %v538 = vld [vmem:[%s3 + $0x28] sm:$0xf]
      %v539 = vld [vmem:[%s3 + $0x2c] sm:$0xf]
      %v540 = vld [vmem:[%s3 + $0x30] sm:$0xf]
      %v541 = vld [vmem:[%s3 + $0x34] sm:$0xf]
      %v542 = vld [vmem:[%s3 + $0x38] sm:$0xf]
      %v543 = vld [vmem:[%s3 + $0x3c] sm:$0xf]
      %v544 = vld [vmem:[%s4] sm:$0x1]
      %v546 = vperm.slane %v544, 0
      %v564 = vunpack.c.l.b16 %v528
      %v565 = vunpack.c.l.b16 %v529
      %v566 = vunpack.c.l.b16 %v530
      %v567 = vunpack.c.l.b16 %v531
      %v568 = vunpack.c.l.b16 %v532
      %v569 = vunpack.c.l.b16 %v533
      %v570 = vunpack.c.l.b16 %v534
      %v571 = vunpack.c.l.b16 %v535
      %v572 = vunpack.c.l.b16 %v536
      %v573 = vunpack.c.l.b16 %v537
      %v574 = vunpack.c.l.b16 %v538
      %v575 = vunpack.c.l.b16 %v539
      %v576 = vunpack.c.l.b16 %v540
      %v577 = vunpack.c.l.b16 %v541
      %v578 = vunpack.c.l.b16 %v542
      %v579 = vunpack.c.l.b16 %v543
      %v580 = vpack.c.b16 %v565, %v564
      %v581 = vpack.c.b16 %v567, %v566
      %v582 = vpack.c.b16 %v569, %v568
      %v583 = vpack.c.b16 %v571, %v570
      %v584 = vpack.c.b16 %v573, %v572
      %v585 = vpack.c.b16 %v575, %v574
      %v586 = vpack.c.b16 %v577, %v576
      %v587 = vpack.c.b16 %v579, %v578
      %596 = vmatpush.bf16.msra.mxu0 %v587
      %597 = vmatpush.bf16.msra.mxu0 %v586
      %598 = vmatpush.bf16.msra.mxu0 %v585
      %599 = vmatpush.bf16.msra.mxu0 %v584
      %600 = vmatpush.bf16.msra.mxu0 %v583
      %601 = vmatpush.bf16.msra.mxu0 %v582
      %602 = vmatpush.bf16.msra.mxu0 %v581
      %603 = vmatpush.bf16.msra.mxu0 %v580
      %604 = vmatmul.bf16.gmra.mxu0 %v427
      %v605 = vpop.f32.mrf.mxu0
      %v606 = vadd.f32 %v546, %v605
      %v607 = vpop.f32.mrf.mxu0
      %v608 = vadd.f32 %v546, %v607
      %609 = vmatmul.bf16.gmra.mxu0 %v428
      %v610 = vpop.f32.mrf.mxu0
      %v611 = vadd.f32 %v546, %v610
      %v612 = vpop.f32.mrf.mxu0
      %v613 = vadd.f32 %v546, %v612
      %614 = vmatmul.bf16.gmra.mxu0 %v429
      %v615 = vpop.f32.mrf.mxu0
      %v616 = vadd.f32 %v546, %v615
      %v617 = vpop.f32.mrf.mxu0
      %v618 = vadd.f32 %v546, %v617
      %619 = vmatmul.bf16.gmra.mxu0 %v430
      %v620 = vpop.f32.mrf.mxu0
      %v621 = vadd.f32 %v546, %v620
      %v622 = vpop.f32.mrf.mxu0
      %v623 = vadd.f32 %v546, %v622
      %624 = vdwg.mxu0
      %v625 = vld [vmem:[%s5] sm:$0xf]
      %v626 = vld [vmem:[%s5 + $0x4] sm:$0xf]
      %v627 = vld [vmem:[%s5 + $0x8] sm:$0xf]
      %v628 = vld [vmem:[%s5 + $0xc] sm:$0xf]
      %v629 = vld [vmem:[%s5 + $0x10] sm:$0xf]
      %v630 = vld [vmem:[%s5 + $0x14] sm:$0xf]
      %v631 = vld [vmem:[%s5 + $0x18] sm:$0xf]
      %v632 = vld [vmem:[%s5 + $0x1c] sm:$0xf]
      %v633 = vld [vmem:[%s5 + $0x20] sm:$0xf]
      %v634 = vld [vmem:[%s5 + $0x24] sm:$0xf]
      %v635 = vld [vmem:[%s5 + $0x28] sm:$0xf]
      %v636 = vld [vmem:[%s5 + $0x2c] sm:$0xf]
      %v637 = vld [vmem:[%s5 + $0x30] sm:$0xf]
      %v638 = vld [vmem:[%s5 + $0x34] sm:$0xf]
      %v639 = vld [vmem:[%s5 + $0x38] sm:$0xf]
      %v640 = vld [vmem:[%s5 + $0x3c] sm:$0xf]
      %v641 = vld [vmem:[%s6] sm:$0x1]
      %v643 = vperm.slane %v641, 0
      %v661 = vunpack.c.l.b16 %v625
      %v662 = vunpack.c.l.b16 %v626
      %v663 = vunpack.c.l.b16 %v627
      %v664 = vunpack.c.l.b16 %v628
      %v665 = vunpack.c.l.b16 %v629
      %v666 = vunpack.c.l.b16 %v630
      %v667 = vunpack.c.l.b16 %v631
      %v668 = vunpack.c.l.b16 %v632
      %v669 = vunpack.c.l.b16 %v633
      %v670 = vunpack.c.l.b16 %v634
      %v671 = vunpack.c.l.b16 %v635
      %v672 = vunpack.c.l.b16 %v636
      %v673 = vunpack.c.l.b16 %v637
      %v674 = vunpack.c.l.b16 %v638
      %v675 = vunpack.c.l.b16 %v639
      %v676 = vunpack.c.l.b16 %v640
      %v677 = vpack.c.b16 %v662, %v661
      %v678 = vpack.c.b16 %v664, %v663
      %v679 = vpack.c.b16 %v666, %v665
      %v680 = vpack.c.b16 %v668, %v667
      %v681 = vpack.c.b16 %v670, %v669
      %v682 = vpack.c.b16 %v672, %v671
      %v683 = vpack.c.b16 %v674, %v673
      %v684 = vpack.c.b16 %v676, %v675
      %693 = vmatpush.bf16.msra.mxu0 %v684
      %694 = vmatpush.bf16.msra.mxu0 %v683
      %695 = vmatpush.bf16.msra.mxu0 %v682
      %696 = vmatpush.bf16.msra.mxu0 %v681
      %697 = vmatpush.bf16.msra.mxu0 %v680
      %698 = vmatpush.bf16.msra.mxu0 %v679
      %699 = vmatpush.bf16.msra.mxu0 %v678
      %700 = vmatpush.bf16.msra.mxu0 %v677
      %701 = vmatmul.bf16.gmra.mxu0 %v427
      %v702 = vpop.f32.mrf.mxu0
      %v703 = vadd.f32 %v643, %v702
      %v704 = vpop.f32.mrf.mxu0
      %v705 = vadd.f32 %v643, %v704
      %706 = vmatmul.bf16.gmra.mxu0 %v428
      %v707 = vpop.f32.mrf.mxu0
      %v708 = vadd.f32 %v643, %v707
      %v709 = vpop.f32.mrf.mxu0
      %v710 = vadd.f32 %v643, %v709
      %711 = vmatmul.bf16.gmra.mxu0 %v429
      %v712 = vpop.f32.mrf.mxu0
      %v713 = vadd.f32 %v643, %v712
      %v714 = vpop.f32.mrf.mxu0
      %v715 = vadd.f32 %v643, %v714
      %716 = vmatmul.bf16.gmra.mxu0 %v430
      %v717 = vpop.f32.mrf.mxu0
      %v718 = vadd.f32 %v643, %v717
      %v719 = vpop.f32.mrf.mxu0
      %v720 = vadd.f32 %v643, %v719
      %721 = vdwg.mxu0
      %v722 = vpack.c.bf16 %v509, %v509
      %v723 = vpack.c.bf16 %v511, %v511
      %v724 = vpack.c.bf16 %v514, %v514
      %v725 = vpack.c.bf16 %v516, %v516
      %v726 = vpack.c.bf16 %v519, %v519
      %v727 = vpack.c.bf16 %v521, %v521
      %v728 = vpack.c.bf16 %v524, %v524
      %v729 = vpack.c.bf16 %v526, %v526
      %vm730 = vcmask 125952
      %731 = vst.msk [vmem:[%s397] sm:$0xf] %vm730, %v722
      %732 = vst.msk [vmem:[%s397 + $0x4] sm:$0xf] %vm730, %v723
      %733 = vst.msk [vmem:[%s397 + $0x8] sm:$0xf] %vm730, %v724
      %734 = vst.msk [vmem:[%s397 + $0xc] sm:$0xf] %vm730, %v725
      %735 = vst.msk [vmem:[%s397 + $0x10] sm:$0xf] %vm730, %v726
      %736 = vst.msk [vmem:[%s397 + $0x14] sm:$0xf] %vm730, %v727
      %737 = vst.msk [vmem:[%s397 + $0x18] sm:$0xf] %vm730, %v728
      %738 = vst.msk [vmem:[%s397 + $0x1c] sm:$0xf] %vm730, %v729
      %v739 = vpack.c.bf16 %v606, %v606
      %v740 = vpack.c.bf16 %v608, %v608
      %v741 = vpack.c.bf16 %v611, %v611
      %v742 = vpack.c.bf16 %v613, %v613
      %v743 = vpack.c.bf16 %v616, %v616
      %v744 = vpack.c.bf16 %v618, %v618
      %v745 = vpack.c.bf16 %v621, %v621
      %v746 = vpack.c.bf16 %v623, %v623
      %747 = vst.msk [vmem:[%s407] sm:$0xf] %vm730, %v739
      %748 = vst.msk [vmem:[%s407 + $0x4] sm:$0xf] %vm730, %v740
      %749 = vst.msk [vmem:[%s407 + $0x8] sm:$0xf] %vm730, %v741
      %750 = vst.msk [vmem:[%s407 + $0xc] sm:$0xf] %vm730, %v742
      %751 = vst.msk [vmem:[%s407 + $0x10] sm:$0xf] %vm730, %v743
      %752 = vst.msk [vmem:[%s407 + $0x14] sm:$0xf] %vm730, %v744
      %753 = vst.msk [vmem:[%s407 + $0x18] sm:$0xf] %vm730, %v745
      %754 = vst.msk [vmem:[%s407 + $0x1c] sm:$0xf] %vm730, %v746
      %v755 = vpack.c.bf16 %v703, %v703
      %v756 = vpack.c.bf16 %v705, %v705
      %v757 = vpack.c.bf16 %v708, %v708
      %v758 = vpack.c.bf16 %v710, %v710
      %v759 = vpack.c.bf16 %v713, %v713
      %v760 = vpack.c.bf16 %v715, %v715
      %v761 = vpack.c.bf16 %v718, %v718
      %v762 = vpack.c.bf16 %v720, %v720
      %763 = vst [vmem:[%s417] sm:$0xf] %v755
      %764 = vst [vmem:[%s417 + $0x4] sm:$0xf] %v756
      %765 = vst [vmem:[%s417 + $0x8] sm:$0xf] %v757
      %766 = vst [vmem:[%s417 + $0xc] sm:$0xf] %v758
      %767 = vst [vmem:[%s417 + $0x10] sm:$0xf] %v759
      %768 = vst [vmem:[%s417 + $0x14] sm:$0xf] %v760
      %769 = vst [vmem:[%s417 + $0x18] sm:$0xf] %v761
      %770 = vst [vmem:[%s417 + $0x1c] sm:$0xf] %v762
      %s771 = smul.u32 8, %s26
      %p772 = scmp.lt.s32.totalorder %s25, 1
      %s773 = scalar_select %p772, %s25, 1
      %p774 = scmp.lt.s32.totalorder %s771, 7
      %s775 = scalar_select %p774, %s771, 7
      %s776 = smul.addr %s773, 8
      %s777 = sadd.s32 %s775, %s776
      %s778 = smul.addr %s777, 4
      %s779 = scalar_lea.vmem %s7, %s778
      %s780 = smul.u32 8, %s26
      %p781 = scmp.lt.s32.totalorder %s25, 1
      %s782 = scalar_select %p781, %s25, 1
      %p783 = scmp.lt.s32.totalorder %s780, 7
      %s784 = scalar_select %p783, %s780, 7
      %s785 = smul.addr %s782, 8
      %s786 = sadd.s32 %s784, %s785
      %s787 = smul.addr %s786, 4
      %s788 = scalar_lea.vmem %s8, %s787
      %s789 = smul.u32 8, %s26
      %p790 = scmp.lt.s32.totalorder %s25, 1
      %s791 = scalar_select %p790, %s25, 1
      %p792 = scmp.lt.s32.totalorder %s789, 7
      %s793 = scalar_select %p792, %s789, 7
      %s794 = smul.addr %s791, 8
      %s795 = sadd.s32 %s793, %s794
      %s796 = smul.addr %s795, 4
      %s797 = scalar_lea.vmem %s9, %s796
      // Predicated region
      $region49: #{pam_forward.2} parent=47 // pred_check
        %p798 = pneg %p207
      $region50: #{pam_forward.2} parent=47 // pred_check_branch
        %800 = sbr.rel (%p798) target = $region52
      $region51: #{pam_forward.2} parent=47 // pred_region
        %s801 = smul.u32 8, %s26
      $region52: #{pam_forward.2} parent=47 // pred_fallthru
        _
      // Predicated region
      $region53: #{pam_forward.2} parent=47 // pred_check
        %p802 = pneg %p235
      $region54: #{pam_forward.2} parent=47 // pred_check_branch
        %804 = sbr.rel (%p802) target = $region56
      $region55: #{pam_forward.2} parent=47 // pred_region
        %s805 = smul.u32 8, %s26
      $region56: #{pam_forward.2} parent=47 // pred_fallthru
        _
      // Predicated region
      $region57: #{pam_forward.2} parent=47 // pred_check
        %p806 = pneg %p263
      $region58: #{pam_forward.2} parent=47 // pred_check_branch
        %808 = sbr.rel (%p806) target = $region60
      $region59: #{pam_forward.2} parent=47 // pred_region
        %s809 = smul.u32 8, %s26
      $region60: #{pam_forward.2} parent=47 // pred_fallthru
        _
    $region48: #{pam_forward.2} parent=5 // pred_fallthru
      _
    %p810 = scmp.le.s32.totalorder 2, %s16
    // Predicated region
    $region61: #{pam_forward.2} parent=5 // pred_check
      %p811 = pneg %p810
    $region62: #{pam_forward.2} parent=5 // pred_check_branch
      %813 = sbr.rel (%p811) target = $region64
    $region63: #{pam_forward.2} parent=5 // pred_region
      %s814 = ssub.s32 %s16, 2
      // Predicated region
      $region65: #{pam_forward.2} parent=63 // pred_check
        %p815 = pneg %p213
      $region66: #{pam_forward.2} parent=63 // pred_check_branch
        %817 = sbr.rel (%p815) target = $region68
      $region67: #{pam_forward.2} parent=63 // pred_region
        %s818 = smul.u32 8, %s28
        %p819 = scmp.lt.s32.totalorder %s27, 1
        %s820 = scalar_select %p819, %s27, 1
        %p821 = scmp.lt.s32.totalorder %s818, 7
        %s822 = scalar_select %p821, %s818, 7
        %s823 = smul.addr %s820, 8
        %s824 = sadd.s32 %s822, %s823
        %s825 = smul.addr %s824, 4
        %s826 = scalar_lea.vmem %s7, %s825
      $region68: #{pam_forward.2} parent=63 // pred_fallthru
        _
      // Predicated region
      $region69: #{pam_forward.2} parent=63 // pred_check
        %p827 = pneg %p241
      $region70: #{pam_forward.2} parent=63 // pred_check_branch
        %829 = sbr.rel (%p827) target = $region72
      $region71: #{pam_forward.2} parent=63 // pred_region
        %s830 = smul.u32 8, %s28
        %p831 = scmp.lt.s32.totalorder %s27, 1
        %s832 = scalar_select %p831, %s27, 1
        %p833 = scmp.lt.s32.totalorder %s830, 7
        %s834 = scalar_select %p833, %s830, 7
        %s835 = smul.addr %s832, 8
        %s836 = sadd.s32 %s834, %s835
        %s837 = smul.addr %s836, 4
        %s838 = scalar_lea.vmem %s8, %s837
      $region72: #{pam_forward.2} parent=63 // pred_fallthru
        _
      // Predicated region
      $region73: #{pam_forward.2} parent=63 // pred_check
        %p839 = pneg %p269
      $region74: #{pam_forward.2} parent=63 // pred_check_branch
        %841 = sbr.rel (%p839) target = $region76
      $region75: #{pam_forward.2} parent=63 // pred_region
        %s842 = smul.u32 8, %s28
        %p843 = scmp.lt.s32.totalorder %s27, 1
        %s844 = scalar_select %p843, %s27, 1
        %p845 = scmp.lt.s32.totalorder %s842, 7
        %s846 = scalar_select %p845, %s842, 7
        %s847 = smul.addr %s844, 8
        %s848 = sadd.s32 %s846, %s847
        %s849 = smul.addr %s848, 4
        %s850 = scalar_lea.vmem %s9, %s849
      $region76: #{pam_forward.2} parent=63 // pred_fallthru
        _
    $region64: #{pam_forward.2} parent=5 // pred_fallthru
      _
  $region6: #{pam_forward.2} parent=0 // loop_footer
    %s20 = sadd.s32 1, %s16
  $region7: #{pam_forward.2} parent=0 // loop_footer_branch
    %15 = sbr.rel target = $region3
  $region8: #{pam_forward.2} parent=0 // loop_exit
    _

</llo_original>
